<compile_context>
chip_gen: v6e
topology: v6e:2x2x1
jax: 0.10.0
libtpu: 0.0.40
codegen_flags: <defaults>
</compile_context>

<pallas_src>
import math
import functools

import jax
import jax.numpy as jnp
from jax.experimental import pallas as pl
from jax.experimental.pallas import tpu as pltpu


# ---------------------------------------------------------------------------
# Tiled linear (y = x @ W + b), shared by in_proj and out_proj.
# ---------------------------------------------------------------------------
def _linear_kernel(x_ref, w_ref, b_ref, o_ref):
    # x_ref: (1, tl, Din), w_ref: (Din, tn), b_ref: (1, tn), o_ref: (1, tl, tn)
    acc = jnp.dot(x_ref[0], w_ref[...], preferred_element_type=jnp.float32)
    o_ref[0] = (acc + b_ref[...]).astype(o_ref.dtype)


def _pick_tile(extent, target):
    """Largest of `target` / full-extent that divides `extent` evenly."""
    return target if extent % target == 0 else extent


def _linear(x, w, b, *, tl_target=128, tn_target=512):
    B, L, Din = x.shape
    Dout = w.shape[1]
    tl = _pick_tile(L, tl_target)
    tn = _pick_tile(Dout, tn_target)
    b2 = b.reshape(1, Dout)

    return pl.pallas_call(
        _linear_kernel,
        out_shape=jax.ShapeDtypeStruct((B, L, Dout), x.dtype),
        grid=(B, L // tl, Dout // tn),
        in_specs=[
            pl.BlockSpec((1, tl, Din), lambda bb, i, n: (bb, i, 0)),   # x tile
            pl.BlockSpec((Din, tn), lambda bb, i, n: (0, n)),          # weight
            pl.BlockSpec((1, tn), lambda bb, i, n: (0, n)),            # bias
        ],
        out_specs=pl.BlockSpec((1, tl, tn), lambda bb, i, n: (bb, i, n)),
        compiler_params=pltpu.CompilerParams(
            dimension_semantics=("parallel", "parallel", "parallel")),
    )(x, w, b2)


# ---------------------------------------------------------------------------
# Flash-style attention over head-major q/k/v: (B, H, L, d_head).
# ---------------------------------------------------------------------------
def _flash_kernel(q_ref, k_ref, v_ref, o_ref, m_sc, l_sc, acc_sc,
                  *, scale, causal, tq, tk):
    i = pl.program_id(2)
    j = pl.program_id(3)

    @pl.when(j == 0)
    def _init():
        m_sc[...] = jnp.full_like(m_sc, -jnp.inf)
        l_sc[...] = jnp.zeros_like(l_sc)
        acc_sc[...] = jnp.zeros_like(acc_sc)

    def _compute():
        # Fold 1/sqrt(d_head) into the (tq, dh) q tile instead of the
        # (tq, tk) scores tile (O(L*dh) vs O(L^2) vector multiplies).
        q = q_ref[0, 0] * scale                       # (tq, dh)
        kt = k_ref[0, 0]                              # (tk, dh)
        vt = v_ref[0, 0]                              # (tk, dh)

        s = jnp.dot(q, kt.T, preferred_element_type=jnp.float32)  # (tq, tk)

        if causal:
            q_pos = i * tq + jax.lax.broadcasted_iota(jnp.int32, (tq, tk), 0)
            k_pos = j * tk + jax.lax.broadcasted_iota(jnp.int32, (tq, tk), 1)
            # PyTorch masks with -inf before scaling; -inf stays -inf.
            s = jnp.where(k_pos > q_pos, -jnp.inf, s)

        # Online softmax update (accumulators resident in VMEM across kv).
        m_prev = m_sc[...]
        m_new = jnp.maximum(m_prev, jnp.max(s, axis=-1, keepdims=True))
        alpha = jnp.exp(m_prev - m_new)
        p = jnp.exp(s - m_new)
        l_sc[...] = alpha * l_sc[...] + jnp.sum(p, axis=-1, keepdims=True)
        acc_sc[...] = alpha * acc_sc[...] + jnp.dot(
            p.astype(vt.dtype), vt, preferred_element_type=jnp.float32)
        m_sc[...] = m_new

    if causal:
        # kv tiles entirely above the diagonal are fully masked and would
        # contribute exactly zero -- skip their compute (the diagonal entry
        # of every query row is always unmasked, so l stays > 0).
        pl.when(j * tk <= i * tq + (tq - 1))(_compute)
    else:
        _compute()

    @pl.when(j == pl.num_programs(3) - 1)
    def _finalize():
        l = l_sc[...]
        # EUP approximate reciprocal + one Newton refinement (near-f32 exact,
        # avoids an f32 divide on the VALU critical path).
        inv_l = pl.reciprocal(l, approx=True)
        inv_l = inv_l * (2.0 - l * inv_l)
        o_ref[0, 0] = (acc_sc[...] * inv_l).astype(o_ref.dtype)


def _flash_attention(q, k, v, *, causal, tq_target=128, tk_target=128):
    B, H, L, dh = q.shape
    # Tile targets: multiples of 128 suit v5e (4x128 MXU) and v6e/v7x alike;
    # q/kv tiling bounds VMEM (no full (L, L) scores), so the kernel also
    # fits v7x's 64 MiB VMEM at SD-scale sequence lengths.
    tq = _pick_tile(L, tq_target)
    tk = _pick_tile(L, tk_target)
    scale = 1.0 / math.sqrt(dh)

    kernel = functools.partial(_flash_kernel, scale=scale, causal=causal,
                               tq=tq, tk=tk)

    return pl.pallas_call(
        kernel,
        out_shape=jax.ShapeDtypeStruct((B, H, L, dh), q.dtype),
        grid=(B, H, L // tq, L // tk),
        in_specs=[
            pl.BlockSpec((1, 1, tq, dh), lambda b, h, i, j: (b, h, i, 0)),
            pl.BlockSpec((1, 1, tk, dh), lambda b, h, i, j: (b, h, j, 0)),
            pl.BlockSpec((1, 1, tk, dh), lambda b, h, i, j: (b, h, j, 0)),
        ],
        out_specs=pl.BlockSpec((1, 1, tq, dh), lambda b, h, i, j: (b, h, i, 0)),
        scratch_shapes=[
            pltpu.VMEM((tq, 1), jnp.float32),    # running max
            pltpu.VMEM((tq, 1), jnp.float32),    # running denom
            pltpu.VMEM((tq, dh), jnp.float32),   # output accumulator
        ],
        compiler_params=pltpu.CompilerParams(
            dimension_semantics=("parallel", "parallel", "parallel",
                                 "arbitrary")),
    )(q, k, v)


# ---------------------------------------------------------------------------
# Full forward pass.
# ---------------------------------------------------------------------------
@functools.partial(jax.jit, static_argnames=("n_heads", "causal_mask"))
def self_attention(x, w_in, b_in, w_out, b_out, *, n_heads, causal_mask=False):
    B, L, D = x.shape
    d_head = D // n_heads

    # in_proj
    qkv = _linear(x, w_in, b_in)                              # (B, L, 3D)

    # head-major layout so per-head slicing in the attention kernel is a
    # tile-aligned block index, not a sub-128 lane slice (cheap XLA op).
    qkv = qkv.reshape(B, L, 3, n_heads, d_head).transpose(2, 0, 3, 1, 4)
    q, k, v = qkv[0], qkv[1], qkv[2]                          # (B, H, L, dh)

    att = _flash_attention(q, k, v, causal=causal_mask)       # (B, H, L, dh)
    att = att.transpose(0, 2, 1, 3).reshape(B, L, D)          # (B, L, D)

    # out_proj
    return _linear(att, w_out, b_out)


# ---------------------------------------------------------------------------
# Pure-JAX reference mirroring the PyTorch forward.
# ---------------------------------------------------------------------------
def _reference(x, w_in, b_in, w_out, b_out, n_heads, causal_mask=False):
    B, L, D = x.shape
    d_head = D // n_heads
    qkv = x @ w_in + b_in
    q, k, v = jnp.split(qkv, 3, axis=-1)

    def heads(t):
        return t.reshape(B, L, n_heads, d_head).transpose(0, 2, 1, 3)

    q, k, v = heads(q), heads(k), heads(v)
    scores = jnp.einsum('bhqd,bhkd->bhqk', q, k)
    if causal_mask:
        mask = jnp.triu(jnp.ones((L, L), dtype=bool), k=1)
        scores = jnp.where(mask, -jnp.inf, scores)
    scores = scores / math.sqrt(d_head)
    probs = jax.nn.softmax(scores, axis=-1)
    out = jnp.einsum('bhqk,bhkd->bhqd', probs, v)
    out = out.transpose(0, 2, 1, 3).reshape(B, L, D)
    return out @ w_out + b_out


def _make_params(key, D):
    k1, k2, k3, k4 = jax.random.split(key, 4)
    bound = 1.0 / math.sqrt(D)
    w_in = jax.random.uniform(k1, (D, 3 * D), jnp.float32, -bound, bound)
    b_in = jax.random.uniform(k2, (3 * D,), jnp.float32, -bound, bound)
    w_out = jax.random.uniform(k3, (D, D), jnp.float32, -bound, bound)
    b_out = jax.random.uniform(k4, (D,), jnp.float32, -bound, bound)
    return w_in, b_in, w_out, b_out


if __name__ == "__main__":
    key = jax.random.PRNGKey(0)

    # --- small shapes consistent with the module's forward -----------------
    B, L, D = 2, 8, 32
    n_heads = 4
    kx, kp = jax.random.split(key)
    x = jax.random.normal(kx, (B, L, D), dtype=jnp.float32)
    w_in, b_in, w_out, b_out = _make_params(kp, D)

    out = jax.block_until_ready(
        self_attention(x, w_in, b_in, w_out, b_out, n_heads=n_heads,
                       causal_mask=False))
    out_c = jax.block_until_ready(
        self_attention(x, w_in, b_in, w_out, b_out, n_heads=n_heads,
                       causal_mask=True))

    ref = _reference(x, w_in, b_in, w_out, b_out, n_heads, causal_mask=False)
    ref_c = _reference(x, w_in, b_in, w_out, b_out, n_heads, causal_mask=True)
    assert jnp.allclose(out, ref, atol=1e-3, rtol=1e-3), "small non-causal mismatch"
    assert jnp.allclose(out_c, ref_c, atol=1e-3, rtol=1e-3), "small causal mismatch"

    # --- larger shape that exercises the tiled / causal-skip paths ---------
    B2, L2, D2, H2 = 2, 256, 64, 4
    kx2, kp2 = jax.random.split(jax.random.PRNGKey(1))
    x2 = jax.random.normal(kx2, (B2, L2, D2), dtype=jnp.float32)
    w_in2, b_in2, w_out2, b_out2 = _make_params(kp2, D2)

    out2 = jax.block_until_ready(
        self_attention(x2, w_in2, b_in2, w_out2, b_out2, n_heads=H2,
                       causal_mask=False))
    out2_c = jax.block_until_ready(
        self_attention(x2, w_in2, b_in2, w_out2, b_out2, n_heads=H2,
                       causal_mask=True))

    ref2 = _reference(x2, w_in2, b_in2, w_out2, b_out2, H2, causal_mask=False)
    ref2_c = _reference(x2, w_in2, b_in2, w_out2, b_out2, H2, causal_mask=True)
    assert jnp.allclose(out2, ref2, atol=2e-3, rtol=2e-3), "tiled non-causal mismatch"
    assert jnp.allclose(out2_c, ref2_c, atol=2e-3, rtol=2e-3), "tiled causal mismatch"

    print("KERNEL_OK")
</pallas_src>

<mosaic_0001>
module attributes {stable_mosaic.version = 11 : i64} {
  func.func @_linear_kernel(%arg0: i32, %arg1: i32, %arg2: i32, %arg3: memref<1x8x32xf32, #tpu.memory_space<vmem>>, %arg4: memref<32x96xf32, #tpu.memory_space<vmem>>, %arg5: memref<1x96xf32, #tpu.memory_space<vmem>>, %arg6: memref<1x8x96xf32, #tpu.memory_space<vmem>>) attributes {dimension_semantics = [#tpu.dimension_semantics<parallel>, #tpu.dimension_semantics<parallel>, #tpu.dimension_semantics<parallel>], iteration_bounds = array<i64: 2, 1, 1>, scalar_prefetch = 0 : i64, scratch_operands = 0 : i64, tpu.core_type = #tpu.core_type<tc>, window_params = [{transform_indices = @transform_0, window_bounds = array<i64: 1, 8, 32>}, {transform_indices = @transform_1, window_bounds = array<i64: 32, 96>}, {transform_indices = @transform_2, window_bounds = array<i64: 1, 96>}, {transform_indices = @transform_3, window_bounds = array<i64: 1, 8, 96>}]} {
    %c0 = arith.constant 0 : index
    %c0_0 = arith.constant 0 : index
    %c0_1 = arith.constant 0 : index
    %0 = vector.load %arg3[%c0, %c0_0, %c0_1] : memref<1x8x32xf32, #tpu.memory_space<vmem>>, vector<1x8x32xf32>
    %1 = vector.shape_cast %0 : vector<1x8x32xf32> to vector<8x32xf32>
    %c0_2 = arith.constant 0 : index
    %c0_3 = arith.constant 0 : index
    %2 = vector.load %arg4[%c0_2, %c0_3] : memref<32x96xf32, #tpu.memory_space<vmem>>, vector<32x96xf32>
    %cst = arith.constant dense<0.000000e+00> : vector<8x96xf32>
    %3 = tpu.matmul %1, %2, %cst {dimension_numbers = #tpu.dot_dimension_numbers<[1], [0], [0], [1], [0, 0, 1, 1], [], []>} : vector<8x32xf32>, vector<32x96xf32>, vector<8x96xf32> -> vector<8x96xf32>
    %c0_4 = arith.constant 0 : index
    %c0_5 = arith.constant 0 : index
    %4 = vector.load %arg5[%c0_4, %c0_5] : memref<1x96xf32, #tpu.memory_space<vmem>>, vector<1x96xf32>
    %5 = vector.broadcast %4 : vector<1x96xf32> to vector<8x96xf32>
    %6 = arith.addf %3, %5 : vector<8x96xf32>
    %c0_6 = arith.constant 0 : index
    %c0_7 = arith.constant 0 : index
    %c0_8 = arith.constant 0 : index
    %7 = vector.load %arg6[%c0_6, %c0_7, %c0_8] : memref<1x8x96xf32, #tpu.memory_space<vmem>>, vector<1x8x96xf32>
    %8 = vector.shape_cast %7 : vector<1x8x96xf32> to vector<8x96xf32>
    %9 = vector.shape_cast %6 : vector<8x96xf32> to vector<1x8x96xf32>
    tpu.vector_store %arg6[%c0_6, %c0_7, %c0_8], %9 {strides = array<i32>} : memref<1x8x96xf32, #tpu.memory_space<vmem>>, vector<1x8x96xf32>,
    return
  }
  func.func @transform_0(%arg0: i32, %arg1: i32, %arg2: i32) -> (i32, i32, i32) {
    %c0_i32 = arith.constant 0 : i32
    %c0_i32_0 = arith.constant 0 : i32
    return %arg0, %arg1, %c0_i32 : i32, i32, i32
  }
  func.func @transform_1(%arg0: i32, %arg1: i32, %arg2: i32) -> (i32, i32) {
    %c0_i32 = arith.constant 0 : i32
    %c0_i32_0 = arith.constant 0 : i32
    return %c0_i32, %arg2 : i32, i32
  }
  func.func @transform_2(%arg0: i32, %arg1: i32, %arg2: i32) -> (i32, i32) {
    %c0_i32 = arith.constant 0 : i32
    %c0_i32_0 = arith.constant 0 : i32
    return %c0_i32, %arg2 : i32, i32
  }
  func.func @transform_3(%arg0: i32, %arg1: i32, %arg2: i32) -> (i32, i32, i32) {
    %c0_i32 = arith.constant 0 : i32
    return %arg0, %arg1, %arg2 : i32, i32, i32
  }
}

module attributes {stable_mosaic.version = 11 : i64} {
  func.func @_flash_kernel(%arg0: i32, %arg1: i32, %arg2: i32, %arg3: i32, %arg4: memref<1x1x8x8xf32, #tpu.memory_space<vmem>>, %arg5: memref<1x1x8x8xf32, #tpu.memory_space<vmem>>, %arg6: memref<1x1x8x8xf32, #tpu.memory_space<vmem>>, %arg7: memref<1x1x8x8xf32, #tpu.memory_space<vmem>>, %arg8: memref<8x1xf32, #tpu.memory_space<vmem>>, %arg9: memref<8x1xf32, #tpu.memory_space<vmem>>, %arg10: memref<8x8xf32, #tpu.memory_space<vmem>>) attributes {dimension_semantics = [#tpu.dimension_semantics<parallel>, #tpu.dimension_semantics<parallel>, #tpu.dimension_semantics<parallel>, #tpu.dimension_semantics<arbitrary>], iteration_bounds = array<i64: 2, 4, 1, 1>, scalar_prefetch = 0 : i64, scratch_operands = 3 : i64, tpu.core_type = #tpu.core_type<tc>, window_params = [{transform_indices = @transform_0, window_bounds = array<i64: 1, 1, 8, 8>}, {transform_indices = @transform_1, window_bounds = array<i64: 1, 1, 8, 8>}, {transform_indices = @transform_2, window_bounds = array<i64: 1, 1, 8, 8>}, {transform_indices = @transform_3, window_bounds = array<i64: 1, 1, 8, 8>}]} {
    %c0_i32 = arith.constant 0 : i32
    %0 = arith.cmpi eq, %arg3, %c0_i32 : i32
    %1 = arith.extui %0 : i1 to i32
    %c0_i32_0 = arith.constant 0 : i32
    %2 = arith.cmpi ne, %1, %c0_i32_0 : i32
    scf.if %2 {
      %cst_30 = arith.constant 0xFF800000 : f32
      %38 = vector.broadcast %cst_30 : f32 to vector<8x1xf32>
      %c0_31 = arith.constant 0 : index
      %c0_32 = arith.constant 0 : index
      %39 = vector.load %arg8[%c0_31, %c0_32] : memref<8x1xf32, #tpu.memory_space<vmem>>, vector<8x1xf32>
      tpu.vector_store %arg8[%c0_31, %c0_32], %38 {strides = array<i32>} : memref<8x1xf32, #tpu.memory_space<vmem>>, vector<8x1xf32>,
      %cst_33 = arith.constant 0.000000e+00 : f32
      %40 = vector.broadcast %cst_33 : f32 to vector<8x1xf32>
      %c0_34 = arith.constant 0 : index
      %c0_35 = arith.constant 0 : index
      %41 = vector.load %arg9[%c0_34, %c0_35] : memref<8x1xf32, #tpu.memory_space<vmem>>, vector<8x1xf32>
      tpu.vector_store %arg9[%c0_34, %c0_35], %40 {strides = array<i32>} : memref<8x1xf32, #tpu.memory_space<vmem>>, vector<8x1xf32>,
      %cst_36 = arith.constant 0.000000e+00 : f32
      %42 = vector.broadcast %cst_36 : f32 to vector<8x8xf32>
      %c0_37 = arith.constant 0 : index
      %c0_38 = arith.constant 0 : index
      %43 = vector.load %arg10[%c0_37, %c0_38] : memref<8x8xf32, #tpu.memory_space<vmem>>, vector<8x8xf32>
      tpu.vector_store %arg10[%c0_37, %c0_38], %42 {strides = array<i32>} : memref<8x8xf32, #tpu.memory_space<vmem>>, vector<8x8xf32>,
    } else {
    }
    %c0 = arith.constant 0 : index
    %c0_1 = arith.constant 0 : index
    %c0_2 = arith.constant 0 : index
    %c0_3 = arith.constant 0 : index
    %3 = vector.load %arg4[%c0, %c0_1, %c0_2, %c0_3] : memref<1x1x8x8xf32, #tpu.memory_space<vmem>>, vector<1x1x8x8xf32>
    %4 = vector.shape_cast %3 : vector<1x1x8x8xf32> to vector<8x8xf32>
    %cst = arith.constant 0.353553385 : f32
    %5 = vector.broadcast %cst : f32 to vector<8x8xf32>
    %6 = arith.mulf %4, %5 : vector<8x8xf32>
    %c0_4 = arith.constant 0 : index
    %c0_5 = arith.constant 0 : index
    %c0_6 = arith.constant 0 : index
    %c0_7 = arith.constant 0 : index
    %7 = vector.load %arg5[%c0_4, %c0_5, %c0_6, %c0_7] : memref<1x1x8x8xf32, #tpu.memory_space<vmem>>, vector<1x1x8x8xf32>
    %8 = vector.shape_cast %7 : vector<1x1x8x8xf32> to vector<8x8xf32>
    %c0_8 = arith.constant 0 : index
    %c0_9 = arith.constant 0 : index
    %c0_10 = arith.constant 0 : index
    %c0_11 = arith.constant 0 : index
    %9 = vector.load %arg6[%c0_8, %c0_9, %c0_10, %c0_11] : memref<1x1x8x8xf32, #tpu.memory_space<vmem>>, vector<1x1x8x8xf32>
    %10 = vector.shape_cast %9 : vector<1x1x8x8xf32> to vector<8x8xf32>
    %11 = tpu.transpose %8, [1, 0] : vector<8x8xf32> -> vector<8x8xf32>
    %cst_12 = arith.constant dense<0.000000e+00> : vector<8x8xf32>
    %12 = tpu.matmul %6, %11, %cst_12 {dimension_numbers = #tpu.dot_dimension_numbers<[1], [0], [0], [1], [0, 0, 1, 1], [], []>} : vector<8x8xf32>, vector<8x8xf32>, vector<8x8xf32> -> vector<8x8xf32>
    %c0_13 = arith.constant 0 : index
    %c0_14 = arith.constant 0 : index
    %13 = vector.load %arg8[%c0_13, %c0_14] : memref<8x1xf32, #tpu.memory_space<vmem>>, vector<8x1xf32>
    %cst_15 = arith.constant dense<0xFF800000> : vector<8xf32>
    %14 = vector.multi_reduction <maximumf>, %12, %cst_15 [1] : vector<8x8xf32> to vector<8xf32>
    %15 = vector.shape_cast %14 : vector<8xf32> to vector<8x1xf32>
    %16 = arith.maximumf %13, %15 : vector<8x1xf32>
    %17 = arith.subf %13, %16 : vector<8x1xf32>
    %18 = math.exp %17 : vector<8x1xf32>
    %19 = vector.broadcast %16 : vector<8x1xf32> to vector<8x8xf32>
    %20 = arith.subf %12, %19 : vector<8x8xf32>
    %21 = math.exp %20 : vector<8x8xf32>
    %c0_16 = arith.constant 0 : index
    %c0_17 = arith.constant 0 : index
    %22 = vector.load %arg9[%c0_16, %c0_17] : memref<8x1xf32, #tpu.memory_space<vmem>>, vector<8x1xf32>
    %23 = arith.mulf %18, %22 : vector<8x1xf32>
    %cst_18 = arith.constant dense<0.000000e+00> : vector<8xf32>
    %24 = vector.multi_reduction <add>, %21, %cst_18 [1] : vector<8x8xf32> to vector<8xf32>
    %25 = vector.shape_cast %24 : vector<8xf32> to vector<8x1xf32>
    %26 = arith.addf %23, %25 : vector<8x1xf32>
    %c0_19 = arith.constant 0 : index
    %c0_20 = arith.constant 0 : index
    %27 = vector.load %arg9[%c0_19, %c0_20] : memref<8x1xf32, #tpu.memory_space<vmem>>, vector<8x1xf32>
    tpu.vector_store %arg9[%c0_19, %c0_20], %26 {strides = array<i32>} : memref<8x1xf32, #tpu.memory_space<vmem>>, vector<8x1xf32>,
    %c0_21 = arith.constant 0 : index
    %c0_22 = arith.constant 0 : index
    %28 = vector.load %arg10[%c0_21, %c0_22] : memref<8x8xf32, #tpu.memory_space<vmem>>, vector<8x8xf32>
    %29 = vector.broadcast %18 : vector<8x1xf32> to vector<8x8xf32>
    %30 = arith.mulf %29, %28 : vector<8x8xf32>
    %cst_23 = arith.constant dense<0.000000e+00> : vector<8x8xf32>
    %31 = tpu.matmul %21, %10, %cst_23 {dimension_numbers = #tpu.dot_dimension_numbers<[1], [0], [0], [1], [0, 0, 1, 1], [], []>} : vector<8x8xf32>, vector<8x8xf32>, vector<8x8xf32> -> vector<8x8xf32>
    %32 = arith.addf %30, %31 : vector<8x8xf32>
    %c0_24 = arith.constant 0 : index
    %c0_25 = arith.constant 0 : index
    %33 = vector.load %arg10[%c0_24, %c0_25] : memref<8x8xf32, #tpu.memory_space<vmem>>, vector<8x8xf32>
    tpu.vector_store %arg10[%c0_24, %c0_25], %32 {strides = array<i32>} : memref<8x8xf32, #tpu.memory_space<vmem>>, vector<8x8xf32>,
    %c0_26 = arith.constant 0 : index
    %c0_27 = arith.constant 0 : index
    %34 = vector.load %arg8[%c0_26, %c0_27] : memref<8x1xf32, #tpu.memory_space<vmem>>, vector<8x1xf32>
    tpu.vector_store %arg8[%c0_26, %c0_27], %16 {strides = array<i32>} : memref<8x1xf32, #tpu.memory_space<vmem>>, vector<8x1xf32>,
    %c0_i32_28 = arith.constant 0 : i32
    %35 = arith.cmpi eq, %arg3, %c0_i32_28 : i32
    %36 = arith.extui %35 : i1 to i32
    %c0_i32_29 = arith.constant 0 : i32
    %37 = arith.cmpi ne, %36, %c0_i32_29 : i32
    scf.if %37 {
      %c0_30 = arith.constant 0 : index
      %c0_31 = arith.constant 0 : index
      %38 = vector.load %arg9[%c0_30, %c0_31] : memref<8x1xf32, #tpu.memory_space<vmem>>, vector<8x1xf32>
      %39 = tpu.reciprocal %38 {approx = true} : vector<8x1xf32> -> vector<8x1xf32>
      %40 = arith.mulf %38, %39 : vector<8x1xf32>
      %cst_32 = arith.constant 2.000000e+00 : f32
      %41 = vector.broadcast %cst_32 : f32 to vector<8x1xf32>
      %42 = arith.subf %41, %40 : vector<8x1xf32>
      %43 = arith.mulf %39, %42 : vector<8x1xf32>
      %c0_33 = arith.constant 0 : index
      %c0_34 = arith.constant 0 : index
      %44 = vector.load %arg10[%c0_33, %c0_34] : memref<8x8xf32, #tpu.memory_space<vmem>>, vector<8x8xf32>
      %45 = vector.broadcast %43 : vector<8x1xf32> to vector<8x8xf32>
      %46 = arith.mulf %44, %45 : vector<8x8xf32>
      %c0_35 = arith.constant 0 : index
      %c0_36 = arith.constant 0 : index
      %c0_37 = arith.constant 0 : index
      %c0_38 = arith.constant 0 : index
      %47 = vector.load %arg7[%c0_35, %c0_36, %c0_37, %c0_38] : memref<1x1x8x8xf32, #tpu.memory_space<vmem>>, vector<1x1x8x8xf32>
      %48 = vector.shape_cast %47 : vector<1x1x8x8xf32> to vector<8x8xf32>
      %49 = vector.shape_cast %46 : vector<8x8xf32> to vector<1x1x8x8xf32>
      tpu.vector_store %arg7[%c0_35, %c0_36, %c0_37, %c0_38], %49 {strides = array<i32>} : memref<1x1x8x8xf32, #tpu.memory_space<vmem>>, vector<1x1x8x8xf32>,
    } else {
    }
    return
  }
  func.func @transform_0(%arg0: i32, %arg1: i32, %arg2: i32, %arg3: i32) -> (i32, i32, i32, i32) {
    %c0_i32 = arith.constant 0 : i32
    %c0_i32_0 = arith.constant 0 : i32
    return %arg0, %arg1, %arg2, %c0_i32 : i32, i32, i32, i32
  }
  func.func @transform_1(%arg0: i32, %arg1: i32, %arg2: i32, %arg3: i32) -> (i32, i32, i32, i32) {
    %c0_i32 = arith.constant 0 : i32
    %c0_i32_0 = arith.constant 0 : i32
    return %arg0, %arg1, %arg3, %c0_i32 : i32, i32, i32, i32
  }
  func.func @transform_2(%arg0: i32, %arg1: i32, %arg2: i32, %arg3: i32) -> (i32, i32, i32, i32) {
    %c0_i32 = arith.constant 0 : i32
    %c0_i32_0 = arith.constant 0 : i32
    return %arg0, %arg1, %arg3, %c0_i32 : i32, i32, i32, i32
  }
  func.func @transform_3(%arg0: i32, %arg1: i32, %arg2: i32, %arg3: i32) -> (i32, i32, i32, i32) {
    %c0_i32 = arith.constant 0 : i32
    %c0_i32_0 = arith.constant 0 : i32
    return %arg0, %arg1, %arg2, %c0_i32 : i32, i32, i32, i32
  }
}

module attributes {stable_mosaic.version = 11 : i64} {
  func.func @_linear_kernel(%arg0: i32, %arg1: i32, %arg2: i32, %arg3: memref<1x8x32xf32, #tpu.memory_space<vmem>>, %arg4: memref<32x32xf32, #tpu.memory_space<vmem>>, %arg5: memref<1x32xf32, #tpu.memory_space<vmem>>, %arg6: memref<1x8x32xf32, #tpu.memory_space<vmem>>) attributes {dimension_semantics = [#tpu.dimension_semantics<parallel>, #tpu.dimension_semantics<parallel>, #tpu.dimension_semantics<parallel>], iteration_bounds = array<i64: 2, 1, 1>, scalar_prefetch = 0 : i64, scratch_operands = 0 : i64, tpu.core_type = #tpu.core_type<tc>, window_params = [{transform_indices = @transform_0, window_bounds = array<i64: 1, 8, 32>}, {transform_indices = @transform_1, window_bounds = array<i64: 32, 32>}, {transform_indices = @transform_2, window_bounds = array<i64: 1, 32>}, {transform_indices = @transform_3, window_bounds = array<i64: 1, 8, 32>}]} {
    %c0 = arith.constant 0 : index
    %c0_0 = arith.constant 0 : index
    %c0_1 = arith.constant 0 : index
    %0 = vector.load %arg3[%c0, %c0_0, %c0_1] : memref<1x8x32xf32, #tpu.memory_space<vmem>>, vector<1x8x32xf32>
    %1 = vector.shape_cast %0 : vector<1x8x32xf32> to vector<8x32xf32>
    %c0_2 = arith.constant 0 : index
    %c0_3 = arith.constant 0 : index
    %2 = vector.load %arg4[%c0_2, %c0_3] : memref<32x32xf32, #tpu.memory_space<vmem>>, vector<32x32xf32>
    %cst = arith.constant dense<0.000000e+00> : vector<8x32xf32>
    %3 = tpu.matmul %1, %2, %cst {dimension_numbers = #tpu.dot_dimension_numbers<[1], [0], [0], [1], [0, 0, 1, 1], [], []>} : vector<8x32xf32>, vector<32x32xf32>, vector<8x32xf32> -> vector<8x32xf32>
    %c0_4 = arith.constant 0 : index
    %c0_5 = arith.constant 0 : index
    %4 = vector.load %arg5[%c0_4, %c0_5] : memref<1x32xf32, #tpu.memory_space<vmem>>, vector<1x32xf32>
    %5 = vector.broadcast %4 : vector<1x32xf32> to vector<8x32xf32>
    %6 = arith.addf %3, %5 : vector<8x32xf32>
    %c0_6 = arith.constant 0 : index
    %c0_7 = arith.constant 0 : index
    %c0_8 = arith.constant 0 : index
    %7 = vector.load %arg6[%c0_6, %c0_7, %c0_8] : memref<1x8x32xf32, #tpu.memory_space<vmem>>, vector<1x8x32xf32>
    %8 = vector.shape_cast %7 : vector<1x8x32xf32> to vector<8x32xf32>
    %9 = vector.shape_cast %6 : vector<8x32xf32> to vector<1x8x32xf32>
    tpu.vector_store %arg6[%c0_6, %c0_7, %c0_8], %9 {strides = array<i32>} : memref<1x8x32xf32, #tpu.memory_space<vmem>>, vector<1x8x32xf32>,
    return
  }
  func.func @transform_0(%arg0: i32, %arg1: i32, %arg2: i32) -> (i32, i32, i32) {
    %c0_i32 = arith.constant 0 : i32
    %c0_i32_0 = arith.constant 0 : i32
    return %arg0, %arg1, %c0_i32 : i32, i32, i32
  }
  func.func @transform_1(%arg0: i32, %arg1: i32, %arg2: i32) -> (i32, i32) {
    %c0_i32 = arith.constant 0 : i32
    %c0_i32_0 = arith.constant 0 : i32
    return %c0_i32, %arg2 : i32, i32
  }
  func.func @transform_2(%arg0: i32, %arg1: i32, %arg2: i32) -> (i32, i32) {
    %c0_i32 = arith.constant 0 : i32
    %c0_i32_0 = arith.constant 0 : i32
    return %c0_i32, %arg2 : i32, i32
  }
  func.func @transform_3(%arg0: i32, %arg1: i32, %arg2: i32) -> (i32, i32, i32) {
    %c0_i32 = arith.constant 0 : i32
    return %arg0, %arg1, %arg2 : i32, i32, i32
  }
}

</mosaic_0001>

<llo_original>
// kernel: self_attention.3
$region0: #{self_attention.3}
  #allocation0 [shape = 'u32[]', space=smem, size = 0x4, offset = 0x4, fixed_abs, tag = 'smem constant byte address 0x4 - core index']
  #allocation1 [shape = 'u32[144,128]{1,0:T(1,128)}', space=vmem, size = 0x12000, scoped, tag = 'internal scratch']
  %s0 = inlined_call_operand.hbm [shape: f32[2,8,32], index: 0, kind: input, shape index: {}]
  %s1 = inlined_call_operand.hbm [shape: f32[32,96], index: 1, kind: input, shape index: {}]
  %s2 = inlined_call_operand.vmem [shape: f32[1,96], index: 2, kind: input, shape index: {}]
  %s3 = inlined_call_operand.vmem [shape: f32[2,8,96], index: 3, kind: output, shape index: {}]
  %s4 = sld [smem:[#allocation0]]
  $region53: #{self_attention.3} parent=0
    _
  %s6 = ssub.s32 1, %s4
  %s7 = scalar_select 0, %s6, %s4
  $region1: #{self_attention.3} parent=0
    #allocation2 [shape = 'u8[8192]{0}', space=vmem, size = 0x2000, scoped, tag = 'input window, operand 0']
    #allocation3 [shape = 's32[2]{0}', space=sflag, size = 0x8, scoped, tag = 'scoped memory for self_attention.3']
    #allocation4 [shape = 'u8[16384]{0}', space=vmem, size = 0x4000, scoped, tag = 'input window, operand 1, single buffered']
    #allocation5 [shape = 's32[1]{0}', space=sflag, size = 0x4, scoped, tag = 'scoped memory for self_attention.3']
    %8 = vsyncpa [#allocation3], 0
    %s9 = scalar_lea.sflag [#allocation3], 1
    %10 = vsyncpa %s9, 0
    %11 = vsyncpa [#allocation5], 0
    loop: start=0, step=1, limit=4
    $region2: #{self_attention.3} parent=1 // loop_pre_header
      _
    $region3: #{self_attention.3} parent=1 // loop_header
      %s13 = sphi 0, %s17
      %p14 = scmp.ge.s32.totalorder %s13, 4
      %s20 = sphi 0, %s39
      %s21 = sphi 0, %s35
      %s22 = sphi 0, %s31
      %s23 = sphi 0, %s20
      %s24 = sphi 0, %s21
      %s25 = sphi 0, %s22
      %s26 = sphi 0, %s23
      %s27 = sphi 0, %s24
      %s28 = sphi 0, %s25
      %s44 = sphi 0, %s46
      %s47 = sphi 0, %s44
      %s48 = sphi 0, %s47
      %s64 = sphi 0, %s48
      %s70 = sphi 0, %s72
      %s73 = sphi 0, %s70
      %s74 = sphi 0, %s73
      %s90 = sphi 0, %s74
      %s96 = sphi 0, %s98
      %s99 = sphi 0, %s96
      %s100 = sphi 0, %s99
      %s116 = sphi 0, %s100
      %s126 = sphi 0, %s128
      %s129 = sphi 0, %s126
      %s130 = sphi 0, %s129
      %s146 = sphi 0, %s130
    $region4: #{self_attention.3} parent=1 // loop_header_branch
      %16 = sbr.rel (%p14) target = $region8
    $region5: #{self_attention.3} parent=1 // loop_body
      %s18 = ssub.s32 %s13, 1
      %s19 = ssub.s32 %s13, 2
      %s29 = sadd.s32 1, %s22
      %p30 = scmp.ge.s32.totalorder %s29, 1
      %s31 = scalar_select %p30, 0, %s29
      %s32 = sadd.s32 1, %s21
      %s33 = scalar_select %p30, %s32, %s21
      %p34 = scmp.ge.s32.totalorder %s33, 1
      %s35 = scalar_select %p34, 0, %s33
      %s36 = sadd.s32 1, %s20
      %s37 = scalar_select %p34, %s36, %s20
      %p38 = scmp.ge.s32.totalorder %s37, 2
      %s39 = scalar_select %p38, 0, %s37
      %s40 = ssub.s32 %s20, %s39
      %s41 = ssub.s32 %s21, %s35
      %s42 = sor.u32 %s40, %s41
      %p43 = scmp.eq.s32.totalorder %s42, 0
      %s45 = sadd.s32 %s44, 1
      %s46 = scalar_select %p43, %s44, %s45
      %p49 = pneg %p43
      %p50 = scmp.eq.s32.totalorder %s13, 1
      %p51 = por %p49, %p50
      %p52 = scmp.ne.s32.totalorder %s44, %s47
      %p53 = scmp.eq.s32.totalorder %s13, 0
      %p54 = por %p52, %p53
      %p55 = scmp.ne.s32.totalorder %s44, %s47
      %p56 = scmp.eq.s32.totalorder %s18, 1
      %p57 = por %p55, %p56
      %p58 = scmp.ne.s32.totalorder %s47, %s48
      %p59 = scmp.eq.s32.totalorder %s18, 0
      %p60 = por %p58, %p59
      %p61 = scmp.ne.s32.totalorder %s47, %s48
      %p62 = scmp.eq.s32.totalorder %s19, 1
      %p63 = por %p61, %p62
      %p65 = scmp.ne.s32.totalorder %s48, %s64
      %p66 = scmp.eq.s32.totalorder %s19, 0
      %p67 = por %p65, %p66
      %s68 = ssub.s32 %s22, %s31
      %p69 = scmp.eq.s32.totalorder %s68, 0
      %s71 = sadd.s32 %s70, 1
      %s72 = scalar_select %p69, %s70, %s71
      %p75 = pneg %p69
      %p76 = scmp.eq.s32.totalorder %s13, 1
      %p77 = por %p75, %p76
      %p78 = scmp.ne.s32.totalorder %s70, %s73
      %p79 = scmp.eq.s32.totalorder %s13, 0
      %p80 = por %p78, %p79
      %p81 = scmp.ne.s32.totalorder %s70, %s73
      %p82 = scmp.eq.s32.totalorder %s18, 1
      %p83 = por %p81, %p82
      %p84 = scmp.ne.s32.totalorder %s73, %s74
      %p85 = scmp.eq.s32.totalorder %s18, 0
      %p86 = por %p84, %p85
      %p87 = scmp.ne.s32.totalorder %s73, %s74
      %p88 = scmp.eq.s32.totalorder %s19, 1
      %p89 = por %p87, %p88
      %p91 = scmp.ne.s32.totalorder %s74, %s90
      %p92 = scmp.eq.s32.totalorder %s19, 0
      %p93 = por %p91, %p92
      %s94 = ssub.s32 %s22, %s31
      %p95 = scmp.eq.s32.totalorder %s94, 0
      %s97 = sadd.s32 %s96, 1
      %s98 = scalar_select %p95, %s96, %s97
      %p101 = pneg %p95
      %p102 = scmp.eq.s32.totalorder %s13, 1
      %p103 = por %p101, %p102
      %p104 = scmp.ne.s32.totalorder %s96, %s99
      %p105 = scmp.eq.s32.totalorder %s13, 0
      %p106 = por %p104, %p105
      %p107 = scmp.ne.s32.totalorder %s96, %s99
      %p108 = scmp.eq.s32.totalorder %s18, 1
      %p109 = por %p107, %p108
      %p110 = scmp.ne.s32.totalorder %s99, %s100
      %p111 = scmp.eq.s32.totalorder %s18, 0
      %p112 = por %p110, %p111
      %p113 = scmp.ne.s32.totalorder %s99, %s100
      %p114 = scmp.eq.s32.totalorder %s19, 1
      %p115 = por %p113, %p114
      %p117 = scmp.ne.s32.totalorder %s100, %s116
      %p118 = scmp.eq.s32.totalorder %s19, 0
      %p119 = por %p117, %p118
      %s120 = ssub.s32 %s20, %s39
      %s121 = ssub.s32 %s21, %s35
      %s122 = sor.u32 %s120, %s121
      %s123 = ssub.s32 %s22, %s31
      %s124 = sor.u32 %s122, %s123
      %p125 = scmp.eq.s32.totalorder %s124, 0
      %s127 = sadd.s32 %s126, 1
      %s128 = scalar_select %p125, %s126, %s127
      %p131 = pneg %p125
      %p132 = scmp.eq.s32.totalorder %s13, 1
      %p133 = por %p131, %p132
      %p134 = scmp.ne.s32.totalorder %s126, %s129
      %p135 = scmp.eq.s32.totalorder %s13, 0
      %p136 = por %p134, %p135
      %p137 = scmp.ne.s32.totalorder %s126, %s129
      %p138 = scmp.eq.s32.totalorder %s18, 1
      %p139 = por %p137, %p138
      %p140 = scmp.ne.s32.totalorder %s129, %s130
      %p141 = scmp.eq.s32.totalorder %s18, 0
      %p142 = por %p140, %p141
      %p143 = scmp.ne.s32.totalorder %s129, %s130
      %p144 = scmp.eq.s32.totalorder %s19, 1
      %p145 = por %p143, %p144
      %p147 = scmp.ne.s32.totalorder %s130, %s146
      %p148 = scmp.eq.s32.totalorder %s19, 0
      %p149 = por %p147, %p148
      %p150 = scmp.le.s32.totalorder 1, %s13
      %p151 = scmp.lt.s32.totalorder %s13, 3
      %p152 = pnand %p150, %p151
      %p153 = pneg %p152
      // Predicated region
      $region9: #{self_attention.3} parent=5 // pred_check
        _
      $region10: #{self_attention.3} parent=5 // pred_check_branch
        %155 = sbr.rel (%p152) target = $region12
      $region11: #{self_attention.3} parent=5 // pred_region
        %s156 = ssub.s32 %s13, 1
        // Predicated region
        $region13: #{self_attention.3} parent=11 // pred_check
          %p157 = pneg %p86
        $region14: #{self_attention.3} parent=11 // pred_check_branch
          %159 = sbr.rel (%p157) target = $region16
        $region15: #{self_attention.3} parent=11 // pred_region
          %s161 = ssub.s32 512, 512
          %162 = vsyncadd [#allocation5], %s161
          %s163 = smul.addr %s25, 128
          %s164 = scalar_lea.hbm %s1, %s163
          %s165 = sshll.u32 [#allocation4], 4
          %s166 = int_to_ptr.vmem [resolvable:$true] %s165
          %171 = dma.hbm_to_vmem [thread:$0]  %s164, 512, %s166, [#allocation5], 128, 128, 8
        $region16: #{self_attention.3} parent=11 // pred_fallthru
          _
        // Predicated region
        $region17: #{self_attention.3} parent=11 // pred_check
          %p172 = pneg %p112
        $region18: #{self_attention.3} parent=11 // pred_check_branch
          %174 = sbr.rel (%p172) target = $region20
        $region19: #{self_attention.3} parent=11 // pred_region
          %p175 = scmp.lt.s32.totalorder %s25, 0
          %s176 = scalar_select %p175, %s25, 0
          %s177 = scalar_lea.vmem %s2, %s176
        $region20: #{self_attention.3} parent=11 // pred_fallthru
          _
      $region12: #{self_attention.3} parent=5 // pred_fallthru
        _
      %p178 = scmp.lt.s32.totalorder %s13, 2
      // Predicated region
      $region21: #{self_attention.3} parent=5 // pred_check
        %p179 = pneg %p178
      $region22: #{self_attention.3} parent=5 // pred_check_branch
        %181 = sbr.rel (%p179) target = $region24
      $region23: #{self_attention.3} parent=5 // pred_region
        // Predicated region
        $region25: #{self_attention.3} parent=23 // pred_check
          %p182 = pneg %p54
        $region26: #{self_attention.3} parent=23 // pred_check_branch
          %184 = sbr.rel (%p182) target = $region28
        $region27: #{self_attention.3} parent=23 // pred_region
          %s185 = sand.u32 %s44, 1
          %s186 = scalar_lea.sflag [#allocation3], %s185
          %s187 = sand.u32 %s44, 1
          %s188 = smul.addr %s187, 8
          %s189 = scalar_lea.vmem [#allocation2], %s188
          %s191 = ssub.s32 128, 128
          %192 = vsyncadd %s186, %s191
          %s193 = sadd.s32 %s21, %s20
          %s194 = smul.addr %s193, 128
          %s195 = scalar_lea.hbm %s0, %s194
          %s197 = sshll.u32 %s189, 4
          %s198 = int_to_ptr.vmem [resolvable:$true] %s197
          %200 = dma.hbm_to_vmem [thread:$0]  %s195, 128, %s198, %s186
        $region28: #{self_attention.3} parent=23 // pred_fallthru
          _
      $region24: #{self_attention.3} parent=5 // pred_fallthru
        _
      %p201 = scmp.le.s32.totalorder 1, %s13
      %p202 = scmp.lt.s32.totalorder %s13, 3
      %p203 = pnand %p201, %p202
      %p204 = pneg %p203
      // Predicated region
      $region29: #{self_attention.3} parent=5 // pred_check
        _
      $region30: #{self_attention.3} parent=5 // pred_check_branch
        %206 = sbr.rel (%p203) target = $region32
      $region31: #{self_attention.3} parent=5 // pred_region
        %s207 = ssub.s32 %s13, 1
        %s208 = sand.u32 %s47, 1
        %s209 = scalar_lea.sflag [#allocation3], %s208
        %s210 = sand.u32 %s47, 1
        %s211 = smul.addr %s210, 8
        %s212 = scalar_lea.vmem [#allocation2], %s211
        // Predicated region
        $region33: #{self_attention.3} parent=31 // pred_check
          %p213 = pneg %p60
        $region34: #{self_attention.3} parent=31 // pred_check_branch
          %215 = sbr.rel (%p213) target = $region36
        $region35: #{self_attention.3} parent=31 // pred_region
          %216 = dma.done %s209, 128
        $region36: #{self_attention.3} parent=31 // pred_fallthru
          _
        // Predicated region
        $region37: #{self_attention.3} parent=31 // pred_check
          %p217 = pneg %p86
        $region38: #{self_attention.3} parent=31 // pred_check_branch
          %219 = sbr.rel (%p217) target = $region40
        $region39: #{self_attention.3} parent=31 // pred_region
          %220 = dma.done [#allocation5], 512
        $region40: #{self_attention.3} parent=31 // pred_fallthru
          _
        %s221 = sand.u32 %s47, 1
        %s222 = scalar_lea.sflag [#allocation3], %s221
        %s223 = sand.u32 %s47, 1
        %s224 = smul.addr %s223, 8
        %s225 = scalar_lea.vmem [#allocation2], %s224
        %p226 = pneg %p60
        %p227 = pneg %p57
        %p228 = pneg %p86
        %p229 = pneg %p83
        %p230 = scmp.lt.s32.totalorder %s25, 0
        %s231 = scalar_select %p230, %s25, 0
        %s232 = scalar_lea.vmem %s2, %s231
        %p233 = pneg %p112
        %p234 = pneg %p109
        %p235 = pneg %p142
        %p236 = pneg %p139
        %p237 = scmp.lt.s32.totalorder %s23, 1
        %s238 = scalar_select %p237, %s23, 1
        %p239 = scmp.lt.s32.totalorder %s24, 0
        %s240 = scalar_select %p239, %s24, 0
        %p241 = scmp.lt.s32.totalorder %s25, 0
        %s242 = scalar_select %p241, %s25, 0
        %s243 = sadd.s32 %s242, %s240
        %s244 = sadd.s32 %s243, %s238
        %s245 = smul.addr %s244, 8
        %s246 = scalar_lea.vmem %s3, %s245
        %p247 = scmp.lt.s32.totalorder %s25, 0
        %s248 = scalar_select %p247, %s25, 0
        %s249 = scalar_lea.vmem %s2, %s248
        %p250 = scmp.lt.s32.totalorder %s23, 1
        %s251 = scalar_select %p250, %s23, 1
        %p252 = scmp.lt.s32.totalorder %s24, 0
        %s253 = scalar_select %p252, %s24, 0
        %p254 = scmp.lt.s32.totalorder %s25, 0
        %s255 = scalar_select %p254, %s25, 0
        %s256 = sadd.s32 %s255, %s253
        %s257 = sadd.s32 %s256, %s251
        %s258 = smul.addr %s257, 8
        %s259 = scalar_lea.vmem %s3, %s258
        %v260 = vld [vmem:[%s212] sm:$0xff]
        %v261 = vld [vmem:[#allocation4] sm:$0xff]
        %v262 = vld [vmem:[#allocation4 + $0x8] sm:$0xff]
        %v263 = vld [vmem:[#allocation4 + $0x10] sm:$0xff]
        %v264 = vld [vmem:[#allocation4 + $0x18] sm:$0xff]
        %v265 = vld [vmem:[%s249] sm:$0x1]
        %v267 = vlaneseq
        %v268 = vshrl.u32 %v267, 7
        %v269 = vsub.s32 0, %v268
        %v270 = vrot.slane %v265, %v269
        %vm272 = vcmask 261120
        %v274 = vsel %vm272, %v260, 0
        %276 = vmatprep.subr.mxu0 0.0
        %277 = vmatpush1.msra.mxu0 0.0
        %278 = vmatprep.subr.mxu0 0.0
        %279 = vmatpush1.msra.mxu0 0.0
        %280 = vmatprep.subr.mxu0 0.0
        %281 = vmatpush1.msra.mxu0 0.0
        %282 = vmatprep.subr.mxu0 0.0
        %283 = vmatpush1.msra.mxu0 0.0
        %284 = vmatprep.subr.mxu0 0.0
        %285 = vmatpush1.msra.mxu0 0.0
        %286 = vmatprep.subr.mxu0 0.0
        %287 = vmatpush1.msra.mxu0 0.0
        %288 = vmatprep.subr.mxu0 0.0
        %289 = vmatpush1.msra.mxu0 0.0
        %290 = vmatprep.subr.mxu0 0.0
        %291 = vmatpush1.msra.mxu0 0.0
        %292 = vmatprep.subr.mxu0 0.0
        %293 = vmatpush1.msra.mxu0 0.0
        %294 = vmatprep.subr.mxu0 0.0
        %295 = vmatpush1.msra.mxu0 0.0
        %296 = vmatprep.subr.mxu0 0.0
        %297 = vmatpush1.msra.mxu0 0.0
        %298 = vmatprep.subr.mxu0 0.0
        %299 = vmatpush1.msra.mxu0 0.0
        %300 = vmatprep.subr.mxu0 0.0
        %301 = vmatpush1.msra.mxu0 %v264
        %302 = vmatprep.subr.mxu0 0.0
        %303 = vmatpush1.msra.mxu0 %v263
        %304 = vmatprep.subr.mxu0 0.0
        %305 = vmatpush1.msra.mxu0 %v262
        %306 = vmatprep.subr.mxu0 0.0
        %307 = vmatpush1.msra.mxu0 %v261
        %308 = vmatprep.subr.mxu0 0.0
        %309 = vmatpush2.msra.mxu0 0.0
        %310 = vmatprep.subr.mxu0 0.0
        %311 = vmatpush2.msra.mxu0 0.0
        %312 = vmatprep.subr.mxu0 0.0
        %313 = vmatpush2.msra.mxu0 0.0
        %314 = vmatprep.subr.mxu0 0.0
        %315 = vmatpush2.msra.mxu0 0.0
        %316 = vmatprep.subr.mxu0 0.0
        %317 = vmatpush2.msra.mxu0 0.0
        %318 = vmatprep.subr.mxu0 0.0
        %319 = vmatpush2.msra.mxu0 0.0
        %320 = vmatprep.subr.mxu0 0.0
        %321 = vmatpush2.msra.mxu0 0.0
        %322 = vmatprep.subr.mxu0 0.0
        %323 = vmatpush2.msra.mxu0 0.0
        %324 = vmatprep.subr.mxu0 0.0
        %325 = vmatpush2.msra.mxu0 0.0
        %326 = vmatprep.subr.mxu0 0.0
        %327 = vmatpush2.msra.mxu0 0.0
        %328 = vmatprep.subr.mxu0 0.0
        %329 = vmatpush2.msra.mxu0 0.0
        %330 = vmatprep.subr.mxu0 0.0
        %331 = vmatpush2.msra.mxu0 0.0
        %332 = vmatprep.subr.mxu0 0.0
        %333 = vmatpush2.msra.mxu0 0.0
        %334 = vmatprep.subr.mxu0 0.0
        %335 = vmatpush2.msra.mxu0 0.0
        %336 = vmatprep.subr.mxu0 0.0
        %337 = vmatpush2.msra.mxu0 0.0
        %338 = vmatprep.subr.mxu0 0.0
        %339 = vmatpush2.msra.mxu0 0.0
        %340 = vmatprep.mubr.f32.mxu0 0.0
        %341 = vmatmul.mubr.f32.gmra.mxu0 %v274
        %v342 = vpop.f32.mrf.mxu0
        %v343 = vadd.f32 %v270, %v342
        %v344 = vpop.f32.mrf.mxu0
        %345 = vdwg.mxu0
        %vm346 = vcmask 785408
        %347 = vst.msk [vmem:[%s259] sm:$0xff] %vm346, %v343
        %p348 = scmp.lt.s32.totalorder %s23, 1
        %s349 = scalar_select %p348, %s23, 1
        %p350 = scmp.lt.s32.totalorder %s24, 0
        %s351 = scalar_select %p350, %s24, 0
        %p352 = scmp.lt.s32.totalorder %s25, 0
        %s353 = scalar_select %p352, %s25, 0
        %s354 = sadd.s32 %s353, %s351
        %s355 = sadd.s32 %s354, %s349
        %s356 = smul.addr %s355, 8
        %s357 = scalar_lea.vmem %s3, %s356
        // Predicated region
        $region41: #{self_attention.3} parent=31 // pred_check
          %p358 = pneg %p139
        $region42: #{self_attention.3} parent=31 // pred_check_branch
          %360 = sbr.rel (%p358) target = $region44
        $region43: #{self_attention.3} parent=31 // pred_region
          _
        $region44: #{self_attention.3} parent=31 // pred_fallthru
          _
      $region32: #{self_attention.3} parent=5 // pred_fallthru
        _
      %p361 = scmp.le.s32.totalorder 2, %s13
      // Predicated region
      $region45: #{self_attention.3} parent=5 // pred_check
        %p362 = pneg %p361
      $region46: #{self_attention.3} parent=5 // pred_check_branch
        %364 = sbr.rel (%p362) target = $region48
      $region47: #{self_attention.3} parent=5 // pred_region
        %s365 = ssub.s32 %s13, 2
        // Predicated region
        $region49: #{self_attention.3} parent=47 // pred_check
          %p366 = pneg %p145
        $region50: #{self_attention.3} parent=47 // pred_check_branch
          %368 = sbr.rel (%p366) target = $region52
        $region51: #{self_attention.3} parent=47 // pred_region
          %p369 = scmp.lt.s32.totalorder %s26, 1
          %s370 = scalar_select %p369, %s26, 1
          %p371 = scmp.lt.s32.totalorder %s27, 0
          %s372 = scalar_select %p371, %s27, 0
          %p373 = scmp.lt.s32.totalorder %s28, 0
          %s374 = scalar_select %p373, %s28, 0
          %s375 = sadd.s32 %s374, %s372
          %s376 = sadd.s32 %s375, %s370
          %s377 = smul.addr %s376, 8
          %s378 = scalar_lea.vmem %s3, %s377
        $region52: #{self_attention.3} parent=47 // pred_fallthru
          _
      $region48: #{self_attention.3} parent=5 // pred_fallthru
        _
    $region6: #{self_attention.3} parent=1 // loop_footer
      %s17 = sadd.s32 1, %s13
    $region7: #{self_attention.3} parent=1 // loop_footer_branch
      %12 = sbr.rel target = $region3
    $region8: #{self_attention.3} parent=1 // loop_exit
      _
    %379 = vsyncpa [#allocation3], 1
    %s380 = scalar_lea.sflag [#allocation3], 1
    %381 = vsyncpa %s380, 1
    %382 = vsyncpa [#allocation5], 1

// kernel: self_attention.4
$region0: #{self_attention.4}
  #allocation0 [shape = 'u32[]', space=smem, size = 0x4, offset = 0x4, fixed_abs, tag = 'smem constant byte address 0x4 - core index']
  #allocation1 [shape = 'u32[144,128]{1,0:T(1,128)}', space=vmem, size = 0x12000, scoped, tag = 'internal scratch']
  #allocation2 [shape = 'f32[8,1]{1,0:T(8,128)}', space=vmem, size = 0x1000, scoped, tag = 'scratch operand']
  #allocation3 [shape = 'f32[8,1]{1,0:T(8,128)}', space=vmem, size = 0x1000, scoped, tag = 'scratch operand']
  #allocation4 [shape = 'f32[8,8]{1,0:T(8,128)}', space=vmem, size = 0x1000, scoped, tag = 'scratch operand']
  %s0 = inlined_call_operand.vmem [shape: f32[2,4,8,8], index: 0, kind: input, shape index: {}]
  %s1 = inlined_call_operand.vmem [shape: f32[2,4,8,8], index: 1, kind: input, shape index: {}]
  %s2 = inlined_call_operand.vmem [shape: f32[2,4,8,8], index: 2, kind: input, shape index: {}]
  %s3 = inlined_call_operand.vmem [shape: f32[2,4,8,8], index: 3, kind: output, shape index: {}]
  %s4 = sld [smem:[#allocation0]]
  $region53: #{self_attention.4} parent=0
    _
  %s6 = ssub.s32 1, %s4
  %s7 = scalar_select 0, %s6, %s4
  loop: start=0, step=1, limit=10
  $region2: #{self_attention.4} parent=0 // loop_pre_header
    _
  $region3: #{self_attention.4} parent=0 // loop_header
    %s9 = sphi 0, %s13
    %p10 = scmp.ge.s32.totalorder %s9, 10
    %s16 = sphi 0, %s42
    %s17 = sphi 0, %s38
    %s18 = sphi 0, %s34
    %s19 = sphi 0, %s30
    %s20 = sphi 0, %s16
    %s21 = sphi 0, %s17
    %s22 = sphi 0, %s18
    %s23 = sphi 0, %s19
    %s24 = sphi 0, %s20
    %s25 = sphi 0, %s21
    %s26 = sphi 0, %s22
    %s27 = sphi 0, %s23
    %s49 = sphi 0, %s51
    %s52 = sphi 0, %s49
    %s53 = sphi 0, %s52
    %s69 = sphi 0, %s53
    %s79 = sphi 0, %s81
    %s82 = sphi 0, %s79
    %s83 = sphi 0, %s82
    %s99 = sphi 0, %s83
    %s109 = sphi 0, %s111
    %s112 = sphi 0, %s109
    %s113 = sphi 0, %s112
    %s129 = sphi 0, %s113
    %s139 = sphi 0, %s141
    %s142 = sphi 0, %s139
    %s143 = sphi 0, %s142
    %s159 = sphi 0, %s143
  $region4: #{self_attention.4} parent=0 // loop_header_branch
    %12 = sbr.rel (%p10) target = $region8
  $region5: #{self_attention.4} parent=0 // loop_body
    %s14 = ssub.s32 %s9, 1
    %s15 = ssub.s32 %s9, 2
    %s28 = sadd.s32 1, %s19
    %p29 = scmp.ge.s32.totalorder %s28, 1
    %s30 = scalar_select %p29, 0, %s28
    %s31 = sadd.s32 1, %s18
    %s32 = scalar_select %p29, %s31, %s18
    %p33 = scmp.ge.s32.totalorder %s32, 1
    %s34 = scalar_select %p33, 0, %s32
    %s35 = sadd.s32 1, %s17
    %s36 = scalar_select %p33, %s35, %s17
    %p37 = scmp.ge.s32.totalorder %s36, 4
    %s38 = scalar_select %p37, 0, %s36
    %s39 = sadd.s32 1, %s16
    %s40 = scalar_select %p37, %s39, %s16
    %p41 = scmp.ge.s32.totalorder %s40, 2
    %s42 = scalar_select %p41, 0, %s40
    %s43 = ssub.s32 %s16, %s42
    %s44 = ssub.s32 %s17, %s38
    %s45 = sor.u32 %s43, %s44
    %s46 = ssub.s32 %s18, %s34
    %s47 = sor.u32 %s45, %s46
    %p48 = scmp.eq.s32.totalorder %s47, 0
    %s50 = sadd.s32 %s49, 1
    %s51 = scalar_select %p48, %s49, %s50
    %p54 = pneg %p48
    %p55 = scmp.eq.s32.totalorder %s9, 7
    %p56 = por %p54, %p55
    %p57 = scmp.ne.s32.totalorder %s49, %s52
    %p58 = scmp.eq.s32.totalorder %s9, 0
    %p59 = por %p57, %p58
    %p60 = scmp.ne.s32.totalorder %s49, %s52
    %p61 = scmp.eq.s32.totalorder %s14, 7
    %p62 = por %p60, %p61
    %p63 = scmp.ne.s32.totalorder %s52, %s53
    %p64 = scmp.eq.s32.totalorder %s14, 0
    %p65 = por %p63, %p64
    %p66 = scmp.ne.s32.totalorder %s52, %s53
    %p67 = scmp.eq.s32.totalorder %s15, 7
    %p68 = por %p66, %p67
    %p70 = scmp.ne.s32.totalorder %s53, %s69
    %p71 = scmp.eq.s32.totalorder %s15, 0
    %p72 = por %p70, %p71
    %s73 = ssub.s32 %s16, %s42
    %s74 = ssub.s32 %s17, %s38
    %s75 = sor.u32 %s73, %s74
    %s76 = ssub.s32 %s19, %s30
    %s77 = sor.u32 %s75, %s76
    %p78 = scmp.eq.s32.totalorder %s77, 0
    %s80 = sadd.s32 %s79, 1
    %s81 = scalar_select %p78, %s79, %s80
    %p84 = pneg %p78
    %p85 = scmp.eq.s32.totalorder %s9, 7
    %p86 = por %p84, %p85
    %p87 = scmp.ne.s32.totalorder %s79, %s82
    %p88 = scmp.eq.s32.totalorder %s9, 0
    %p89 = por %p87, %p88
    %p90 = scmp.ne.s32.totalorder %s79, %s82
    %p91 = scmp.eq.s32.totalorder %s14, 7
    %p92 = por %p90, %p91
    %p93 = scmp.ne.s32.totalorder %s82, %s83
    %p94 = scmp.eq.s32.totalorder %s14, 0
    %p95 = por %p93, %p94
    %p96 = scmp.ne.s32.totalorder %s82, %s83
    %p97 = scmp.eq.s32.totalorder %s15, 7
    %p98 = por %p96, %p97
    %p100 = scmp.ne.s32.totalorder %s83, %s99
    %p101 = scmp.eq.s32.totalorder %s15, 0
    %p102 = por %p100, %p101
    %s103 = ssub.s32 %s16, %s42
    %s104 = ssub.s32 %s17, %s38
    %s105 = sor.u32 %s103, %s104
    %s106 = ssub.s32 %s19, %s30
    %s107 = sor.u32 %s105, %s106
    %p108 = scmp.eq.s32.totalorder %s107, 0
    %s110 = sadd.s32 %s109, 1
    %s111 = scalar_select %p108, %s109, %s110
    %p114 = pneg %p108
    %p115 = scmp.eq.s32.totalorder %s9, 7
    %p116 = por %p114, %p115
    %p117 = scmp.ne.s32.totalorder %s109, %s112
    %p118 = scmp.eq.s32.totalorder %s9, 0
    %p119 = por %p117, %p118
    %p120 = scmp.ne.s32.totalorder %s109, %s112
    %p121 = scmp.eq.s32.totalorder %s14, 7
    %p122 = por %p120, %p121
    %p123 = scmp.ne.s32.totalorder %s112, %s113
    %p124 = scmp.eq.s32.totalorder %s14, 0
    %p125 = por %p123, %p124
    %p126 = scmp.ne.s32.totalorder %s112, %s113
    %p127 = scmp.eq.s32.totalorder %s15, 7
    %p128 = por %p126, %p127
    %p130 = scmp.ne.s32.totalorder %s113, %s129
    %p131 = scmp.eq.s32.totalorder %s15, 0
    %p132 = por %p130, %p131
    %s133 = ssub.s32 %s16, %s42
    %s134 = ssub.s32 %s17, %s38
    %s135 = sor.u32 %s133, %s134
    %s136 = ssub.s32 %s18, %s34
    %s137 = sor.u32 %s135, %s136
    %p138 = scmp.eq.s32.totalorder %s137, 0
    %s140 = sadd.s32 %s139, 1
    %s141 = scalar_select %p138, %s139, %s140
    %p144 = pneg %p138
    %p145 = scmp.eq.s32.totalorder %s9, 7
    %p146 = por %p144, %p145
    %p147 = scmp.ne.s32.totalorder %s139, %s142
    %p148 = scmp.eq.s32.totalorder %s9, 0
    %p149 = por %p147, %p148
    %p150 = scmp.ne.s32.totalorder %s139, %s142
    %p151 = scmp.eq.s32.totalorder %s14, 7
    %p152 = por %p150, %p151
    %p153 = scmp.ne.s32.totalorder %s142, %s143
    %p154 = scmp.eq.s32.totalorder %s14, 0
    %p155 = por %p153, %p154
    %p156 = scmp.ne.s32.totalorder %s142, %s143
    %p157 = scmp.eq.s32.totalorder %s15, 7
    %p158 = por %p156, %p157
    %p160 = scmp.ne.s32.totalorder %s143, %s159
    %p161 = scmp.eq.s32.totalorder %s15, 0
    %p162 = por %p160, %p161
    %p163 = scmp.le.s32.totalorder 1, %s9
    %p164 = scmp.lt.s32.totalorder %s9, 9
    %p165 = pnand %p163, %p164
    %p166 = pneg %p165
    // Predicated region
    $region9: #{self_attention.4} parent=5 // pred_check
      _
    $region10: #{self_attention.4} parent=5 // pred_check_branch
      %168 = sbr.rel (%p165) target = $region12
    $region11: #{self_attention.4} parent=5 // pred_region
      %s169 = ssub.s32 %s9, 1
    $region12: #{self_attention.4} parent=5 // pred_fallthru
      _
    %p170 = scmp.lt.s32.totalorder %s9, 8
    // Predicated region
    $region13: #{self_attention.4} parent=5 // pred_check
      %p171 = pneg %p170
    $region14: #{self_attention.4} parent=5 // pred_check_branch
      %173 = sbr.rel (%p171) target = $region16
    $region15: #{self_attention.4} parent=5 // pred_region
      // Predicated region
      $region17: #{self_attention.4} parent=15 // pred_check
        %p174 = pneg %p59
      $region18: #{self_attention.4} parent=15 // pred_check_branch
        %176 = sbr.rel (%p174) target = $region20
      $region19: #{self_attention.4} parent=15 // pred_region
        %p177 = scmp.lt.s32.totalorder %s16, 1
        %s178 = scalar_select %p177, %s16, 1
        %p179 = scmp.lt.s32.totalorder %s17, 3
        %s180 = scalar_select %p179, %s17, 3
        %p181 = scmp.lt.s32.totalorder %s18, 0
        %s182 = scalar_select %p181, %s18, 0
        %s183 = sadd.s32 %s182, %s180
        %s184 = smul.addr %s178, 4
        %s185 = sadd.s32 %s183, %s184
        %s186 = smul.addr %s185, 8
        %s187 = scalar_lea.vmem %s0, %s186
      $region20: #{self_attention.4} parent=15 // pred_fallthru
        _
      // Predicated region
      $region21: #{self_attention.4} parent=15 // pred_check
        %p188 = pneg %p89
      $region22: #{self_attention.4} parent=15 // pred_check_branch
        %190 = sbr.rel (%p188) target = $region24
      $region23: #{self_attention.4} parent=15 // pred_region
        %p191 = scmp.lt.s32.totalorder %s16, 1
        %s192 = scalar_select %p191, %s16, 1
        %p193 = scmp.lt.s32.totalorder %s17, 3
        %s194 = scalar_select %p193, %s17, 3
        %p195 = scmp.lt.s32.totalorder %s19, 0
        %s196 = scalar_select %p195, %s19, 0
        %s197 = sadd.s32 %s196, %s194
        %s198 = smul.addr %s192, 4
        %s199 = sadd.s32 %s197, %s198
        %s200 = smul.addr %s199, 8
        %s201 = scalar_lea.vmem %s1, %s200
      $region24: #{self_attention.4} parent=15 // pred_fallthru
        _
      // Predicated region
      $region25: #{self_attention.4} parent=15 // pred_check
        %p202 = pneg %p119
      $region26: #{self_attention.4} parent=15 // pred_check_branch
        %204 = sbr.rel (%p202) target = $region28
      $region27: #{self_attention.4} parent=15 // pred_region
        %p205 = scmp.lt.s32.totalorder %s16, 1
        %s206 = scalar_select %p205, %s16, 1
        %p207 = scmp.lt.s32.totalorder %s17, 3
        %s208 = scalar_select %p207, %s17, 3
        %p209 = scmp.lt.s32.totalorder %s19, 0
        %s210 = scalar_select %p209, %s19, 0
        %s211 = sadd.s32 %s210, %s208
        %s212 = smul.addr %s206, 4
        %s213 = sadd.s32 %s211, %s212
        %s214 = smul.addr %s213, 8
        %s215 = scalar_lea.vmem %s2, %s214
      $region28: #{self_attention.4} parent=15 // pred_fallthru
        _
    $region16: #{self_attention.4} parent=5 // pred_fallthru
      _
    %p216 = scmp.le.s32.totalorder 1, %s9
    %p217 = scmp.lt.s32.totalorder %s9, 9
    %p218 = pnand %p216, %p217
    %p219 = pneg %p218
    // Predicated region
    $region29: #{self_attention.4} parent=5 // pred_check
      _
    $region30: #{self_attention.4} parent=5 // pred_check_branch
      %221 = sbr.rel (%p218) target = $region32
    $region31: #{self_attention.4} parent=5 // pred_region
      %s222 = ssub.s32 %s9, 1
      %p223 = scmp.lt.s32.totalorder %s20, 1
      %s224 = scalar_select %p223, %s20, 1
      %p225 = scmp.lt.s32.totalorder %s21, 3
      %s226 = scalar_select %p225, %s21, 3
      %p227 = scmp.lt.s32.totalorder %s22, 0
      %s228 = scalar_select %p227, %s22, 0
      %s229 = sadd.s32 %s228, %s226
      %s230 = smul.addr %s224, 4
      %s231 = sadd.s32 %s229, %s230
      %s232 = smul.addr %s231, 8
      %s233 = scalar_lea.vmem %s0, %s232
      %p234 = pneg %p65
      %p235 = pneg %p62
      %p236 = scmp.lt.s32.totalorder %s20, 1
      %s237 = scalar_select %p236, %s20, 1
      %p238 = scmp.lt.s32.totalorder %s21, 3
      %s239 = scalar_select %p238, %s21, 3
      %p240 = scmp.lt.s32.totalorder %s23, 0
      %s241 = scalar_select %p240, %s23, 0
      %s242 = sadd.s32 %s241, %s239
      %s243 = smul.addr %s237, 4
      %s244 = sadd.s32 %s242, %s243
      %s245 = smul.addr %s244, 8
      %s246 = scalar_lea.vmem %s1, %s245
      %p247 = pneg %p95
      %p248 = pneg %p92
      %p249 = scmp.lt.s32.totalorder %s20, 1
      %s250 = scalar_select %p249, %s20, 1
      %p251 = scmp.lt.s32.totalorder %s21, 3
      %s252 = scalar_select %p251, %s21, 3
      %p253 = scmp.lt.s32.totalorder %s23, 0
      %s254 = scalar_select %p253, %s23, 0
      %s255 = sadd.s32 %s254, %s252
      %s256 = smul.addr %s250, 4
      %s257 = sadd.s32 %s255, %s256
      %s258 = smul.addr %s257, 8
      %s259 = scalar_lea.vmem %s2, %s258
      %p260 = pneg %p125
      %p261 = pneg %p122
      %p262 = pneg %p155
      %p263 = pneg %p152
      %p264 = scmp.lt.s32.totalorder %s20, 1
      %s265 = scalar_select %p264, %s20, 1
      %p266 = scmp.lt.s32.totalorder %s21, 3
      %s267 = scalar_select %p266, %s21, 3
      %p268 = scmp.lt.s32.totalorder %s22, 0
      %s269 = scalar_select %p268, %s22, 0
      %s270 = sadd.s32 %s269, %s267
      %s271 = smul.addr %s265, 4
      %s272 = sadd.s32 %s270, %s271
      %s273 = smul.addr %s272, 8
      %s274 = scalar_lea.vmem %s3, %s273
      %p275 = scmp.lt.s32.totalorder %s20, 1
      %s276 = scalar_select %p275, %s20, 1
      %p277 = scmp.lt.s32.totalorder %s21, 3
      %s278 = scalar_select %p277, %s21, 3
      %p279 = scmp.lt.s32.totalorder %s22, 0
      %s280 = scalar_select %p279, %s22, 0
      %s281 = sadd.s32 %s280, %s278
      %s282 = smul.addr %s276, 4
      %s283 = sadd.s32 %s281, %s282
      %s284 = smul.addr %s283, 8
      %s285 = scalar_lea.vmem %s0, %s284
      %p286 = scmp.lt.s32.totalorder %s20, 1
      %s287 = scalar_select %p286, %s20, 1
      %p288 = scmp.lt.s32.totalorder %s21, 3
      %s289 = scalar_select %p288, %s21, 3
      %p290 = scmp.lt.s32.totalorder %s23, 0
      %s291 = scalar_select %p290, %s23, 0
      %s292 = sadd.s32 %s291, %s289
      %s293 = smul.addr %s287, 4
      %s294 = sadd.s32 %s292, %s293
      %s295 = smul.addr %s294, 8
      %s296 = scalar_lea.vmem %s1, %s295
      %p297 = scmp.lt.s32.totalorder %s20, 1
      %s298 = scalar_select %p297, %s20, 1
      %p299 = scmp.lt.s32.totalorder %s21, 3
      %s300 = scalar_select %p299, %s21, 3
      %p301 = scmp.lt.s32.totalorder %s23, 0
      %s302 = scalar_select %p301, %s23, 0
      %s303 = sadd.s32 %s302, %s300
      %s304 = smul.addr %s298, 4
      %s305 = sadd.s32 %s303, %s304
      %s306 = smul.addr %s305, 8
      %s307 = scalar_lea.vmem %s2, %s306
      %p308 = scmp.lt.s32.totalorder %s20, 1
      %s309 = scalar_select %p308, %s20, 1
      %p310 = scmp.lt.s32.totalorder %s21, 3
      %s311 = scalar_select %p310, %s21, 3
      %p312 = scmp.lt.s32.totalorder %s22, 0
      %s313 = scalar_select %p312, %s22, 0
      %s314 = sadd.s32 %s313, %s311
      %s315 = smul.addr %s309, 4
      %s316 = sadd.s32 %s314, %s315
      %s317 = smul.addr %s316, 8
      %s318 = scalar_lea.vmem %s3, %s317
      %p319 = scmp.eq.s32.totalorder %s23, 0
      // Predicated region
      $region33: #{self_attention.4} parent=31 // pred_check
        %p320 = pneg %p319
      $region34: #{self_attention.4} parent=31 // pred_check_branch
        %322 = sbr.rel (%p320) target = $region36
      $region35: #{self_attention.4} parent=31 // pred_region
        %vm323 = vcmask 7168
        %324 = vst.msk [vmem:[#allocation2] sm:$0xff] %vm323, -inf
        %325 = vst.msk [vmem:[#allocation3] sm:$0xff] %vm323, 0.0
        %vm326 = vcmask 64512
        %327 = vst.msk [vmem:[#allocation4] sm:$0xff] %vm326, 0.0
      $region36: #{self_attention.4} parent=31 // pred_fallthru
        _
      %v328 = vld [vmem:[%s285] sm:$0xff]
      %v329 = vmul.f32 %v328, 0.35355338
      %v330 = vld [vmem:[%s296] sm:$0xff]
      %v331 = vld [vmem:[%s307] sm:$0xff]
      %vm332 = vcmask 64512
      %v334 = vsel %vm332, %v329, 0
      %v337 = vsel %vm332, %v330, 0
      %339 = vmatprep.subr.mxu0 0.0
      %340 = vmatpush1.xpose.msra.mxu0 0.0
      %341 = vmatprep.subr.mxu0 0.0
      %342 = vmatpush1.xpose.msra.mxu0 0.0
      %343 = vmatprep.subr.mxu0 0.0
      %344 = vmatpush1.xpose.msra.mxu0 0.0
      %345 = vmatprep.subr.mxu0 0.0
      %346 = vmatpush1.xpose.msra.mxu0 0.0
      %347 = vmatprep.subr.mxu0 0.0
      %348 = vmatpush1.xpose.msra.mxu0 0.0
      %349 = vmatprep.subr.mxu0 0.0
      %350 = vmatpush1.xpose.msra.mxu0 0.0
      %351 = vmatprep.subr.mxu0 0.0
      %352 = vmatpush1.xpose.msra.mxu0 0.0
      %353 = vmatprep.subr.mxu0 0.0
      %354 = vmatpush1.xpose.msra.mxu0 0.0
      %355 = vmatprep.subr.mxu0 0.0
      %356 = vmatpush1.xpose.msra.mxu0 0.0
      %357 = vmatprep.subr.mxu0 0.0
      %358 = vmatpush1.xpose.msra.mxu0 0.0
      %359 = vmatprep.subr.mxu0 0.0
      %360 = vmatpush1.xpose.msra.mxu0 0.0
      %361 = vmatprep.subr.mxu0 0.0
      %362 = vmatpush1.xpose.msra.mxu0 0.0
      %363 = vmatprep.subr.mxu0 0.0
      %364 = vmatpush1.xpose.msra.mxu0 0.0
      %365 = vmatprep.subr.mxu0 0.0
      %366 = vmatpush1.xpose.msra.mxu0 0.0
      %367 = vmatprep.subr.mxu0 0.0
      %368 = vmatpush1.xpose.msra.mxu0 0.0
      %369 = vmatprep.subr.mxu0 0.0
      %370 = vmatpush1.xpose.msra.mxu0 %v337
      %371 = vmatprep.subr.mxu0 0.0
      %372 = vmatpush2.xpose.msra.mxu0 0.0
      %373 = vmatprep.subr.mxu0 0.0
      %374 = vmatpush2.xpose.msra.mxu0 0.0
      %375 = vmatprep.subr.mxu0 0.0
      %376 = vmatpush2.xpose.msra.mxu0 0.0
      %377 = vmatprep.subr.mxu0 0.0
      %378 = vmatpush2.xpose.msra.mxu0 0.0
      %379 = vmatprep.subr.mxu0 0.0
      %380 = vmatpush2.xpose.msra.mxu0 0.0
      %381 = vmatprep.subr.mxu0 0.0
      %382 = vmatpush2.xpose.msra.mxu0 0.0
      %383 = vmatprep.subr.mxu0 0.0
      %384 = vmatpush2.xpose.msra.mxu0 0.0
      %385 = vmatprep.subr.mxu0 0.0
      %386 = vmatpush2.xpose.msra.mxu0 0.0
      %387 = vmatprep.subr.mxu0 0.0
      %388 = vmatpush2.xpose.msra.mxu0 0.0
      %389 = vmatprep.subr.mxu0 0.0
      %390 = vmatpush2.xpose.msra.mxu0 0.0
      %391 = vmatprep.subr.mxu0 0.0
      %392 = vmatpush2.xpose.msra.mxu0 0.0
      %393 = vmatprep.subr.mxu0 0.0
      %394 = vmatpush2.xpose.msra.mxu0 0.0
      %395 = vmatprep.subr.mxu0 0.0
      %396 = vmatpush2.xpose.msra.mxu0 0.0
      %397 = vmatprep.subr.mxu0 0.0
      %398 = vmatpush2.xpose.msra.mxu0 0.0
      %399 = vmatprep.subr.mxu0 0.0
      %400 = vmatpush2.xpose.msra.mxu0 0.0
      %401 = vmatprep.subr.mxu0 0.0
      %402 = vmatpush2.xpose.msra.mxu0 0.0
      %403 = vmatprep.mubr.f32.mxu0 0.0
      %404 = vmatmul.mubr.f32.gmra.mxu0 %v334
      %v405 = vpop.f32.mrf.mxu0
      %v406 = vadd.f32 0.0, %v405
      %v407 = vpop.f32.mrf.mxu0
      %408 = vdwg.mxu0
      %v409 = vld [vmem:[#allocation2] sm:$0xff]
      %v410 = vsel %vm332, %v406, -inf
      %411 = vmax.xlane.f32.xlu0 %v410
      %v412 = vpop.xlane.xlu0 %411
      %v413 = vmax.f32 %v409, %v412
      %v414 = vsub.f32 %v409, %v413
      %v415 = vmul.f32 %v414, 1.442695
      %v416 = vpow.pop %v415
      %418 = vset.pattern.permute.xlu0 0
      %419 = vperm.xlu0 %418, %v413
      %v420 = vpop.permute.xlu0 %419
      %v422 = vsub.f32 %v406, %v420
      %v423 = vmul.f32 %v422, 1.442695
      %v424 = vpow.pop %v423
      %v425 = vld [vmem:[#allocation3] sm:$0xff]
      %v426 = vmul.f32 %v416, %v425
      %v427 = vsel %vm332, %v424, 0.0
      %428 = vadd.xlane.f32.xlu0 %v427
      %v429 = vpop.xlane.xlu0 %428
      %v430 = vadd.f32 %v426, %v429
      %vm431 = vcmask 7168
      %432 = vst.msk [vmem:[#allocation3] sm:$0xff] %vm431, %v430
      %v433 = vld [vmem:[#allocation4] sm:$0xff]
      %435 = vset.pattern.permute.xlu0 0
      %436 = vperm.xlu0 %435, %v416
      %v437 = vpop.permute.xlu0 %436
      %v439 = vmul.f32 %v437, %v433
      %v441 = vsel %vm332, %v424, 0
      %443 = vmatprep.subr.mxu0 0.0
      %444 = vmatpush1.msra.mxu0 0.0
      %445 = vmatprep.subr.mxu0 0.0
      %446 = vmatpush1.msra.mxu0 0.0
      %447 = vmatprep.subr.mxu0 0.0
      %448 = vmatpush1.msra.mxu0 0.0
      %449 = vmatprep.subr.mxu0 0.0
      %450 = vmatpush1.msra.mxu0 0.0
      %451 = vmatprep.subr.mxu0 0.0
      %452 = vmatpush1.msra.mxu0 0.0
      %453 = vmatprep.subr.mxu0 0.0
      %454 = vmatpush1.msra.mxu0 0.0
      %455 = vmatprep.subr.mxu0 0.0
      %456 = vmatpush1.msra.mxu0 0.0
      %457 = vmatprep.subr.mxu0 0.0
      %458 = vmatpush1.msra.mxu0 0.0
      %459 = vmatprep.subr.mxu0 0.0
      %460 = vmatpush1.msra.mxu0 0.0
      %461 = vmatprep.subr.mxu0 0.0
      %462 = vmatpush1.msra.mxu0 0.0
      %463 = vmatprep.subr.mxu0 0.0
      %464 = vmatpush1.msra.mxu0 0.0
      %465 = vmatprep.subr.mxu0 0.0
      %466 = vmatpush1.msra.mxu0 0.0
      %467 = vmatprep.subr.mxu0 0.0
      %468 = vmatpush1.msra.mxu0 0.0
      %469 = vmatprep.subr.mxu0 0.0
      %470 = vmatpush1.msra.mxu0 0.0
      %471 = vmatprep.subr.mxu0 0.0
      %472 = vmatpush1.msra.mxu0 0.0
      %473 = vmatprep.subr.mxu0 0.0
      %474 = vmatpush1.msra.mxu0 %v331
      %475 = vmatprep.subr.mxu0 0.0
      %476 = vmatpush2.msra.mxu0 0.0
      %477 = vmatprep.subr.mxu0 0.0
      %478 = vmatpush2.msra.mxu0 0.0
      %479 = vmatprep.subr.mxu0 0.0
      %480 = vmatpush2.msra.mxu0 0.0
      %481 = vmatprep.subr.mxu0 0.0
      %482 = vmatpush2.msra.mxu0 0.0
      %483 = vmatprep.subr.mxu0 0.0
      %484 = vmatpush2.msra.mxu0 0.0
      %485 = vmatprep.subr.mxu0 0.0
      %486 = vmatpush2.msra.mxu0 0.0
      %487 = vmatprep.subr.mxu0 0.0
      %488 = vmatpush2.msra.mxu0 0.0
      %489 = vmatprep.subr.mxu0 0.0
      %490 = vmatpush2.msra.mxu0 0.0
      %491 = vmatprep.subr.mxu0 0.0
      %492 = vmatpush2.msra.mxu0 0.0
      %493 = vmatprep.subr.mxu0 0.0
      %494 = vmatpush2.msra.mxu0 0.0
      %495 = vmatprep.subr.mxu0 0.0
      %496 = vmatpush2.msra.mxu0 0.0
      %497 = vmatprep.subr.mxu0 0.0
      %498 = vmatpush2.msra.mxu0 0.0
      %499 = vmatprep.subr.mxu0 0.0
      %500 = vmatpush2.msra.mxu0 0.0
      %501 = vmatprep.subr.mxu0 0.0
      %502 = vmatpush2.msra.mxu0 0.0
      %503 = vmatprep.subr.mxu0 0.0
      %504 = vmatpush2.msra.mxu0 0.0
      %505 = vmatprep.subr.mxu0 0.0
      %506 = vmatpush2.msra.mxu0 0.0
      %507 = vmatprep.mubr.f32.mxu0 0.0
      %508 = vmatmul.mubr.f32.gmra.mxu0 %v441
      %v509 = vpop.f32.mrf.mxu0
      %v510 = vadd.f32 0.0, %v509
      %v511 = vpop.f32.mrf.mxu0
      %512 = vdwg.mxu0
      %v513 = vadd.f32 %v439, %v510
      %514 = vst.msk [vmem:[#allocation4] sm:$0xff] %vm332, %v513
      %515 = vst.msk [vmem:[#allocation2] sm:$0xff] %vm431, %v413
      // Predicated region
      $region37: #{self_attention.4} parent=31 // pred_check
        %p516 = pneg %p319
      $region38: #{self_attention.4} parent=31 // pred_check_branch
        %518 = sbr.rel (%p516) target = $region40
      $region39: #{self_attention.4} parent=31 // pred_region
        %v519 = vld [vmem:[#allocation3] sm:$0xff]
        %v520 = vrcp.pop %v519
        %v521 = vmul.f32 %v519, %v520
        %v522 = vsub.f32 2.0, %v521
        %v523 = vmul.f32 %v520, %v522
        %v524 = vld [vmem:[#allocation4] sm:$0xff]
        %526 = vset.pattern.permute.xlu0 0
        %527 = vperm.xlu0 %526, %v523
        %v528 = vpop.permute.xlu0 %527
        %v530 = vmul.f32 %v524, %v528
        %531 = vst.msk [vmem:[%s318] sm:$0xff] %vm332, %v530
      $region40: #{self_attention.4} parent=31 // pred_fallthru
        _
      %p532 = scmp.lt.s32.totalorder %s20, 1
      %s533 = scalar_select %p532, %s20, 1
      %p534 = scmp.lt.s32.totalorder %s21, 3
      %s535 = scalar_select %p534, %s21, 3
      %p536 = scmp.lt.s32.totalorder %s22, 0
      %s537 = scalar_select %p536, %s22, 0
      %s538 = sadd.s32 %s537, %s535
      %s539 = smul.addr %s533, 4
      %s540 = sadd.s32 %s538, %s539
      %s541 = smul.addr %s540, 8
      %s542 = scalar_lea.vmem %s3, %s541
      // Predicated region
      $region41: #{self_attention.4} parent=31 // pred_check
        %p543 = pneg %p152
      $region42: #{self_attention.4} parent=31 // pred_check_branch
        %545 = sbr.rel (%p543) target = $region44
      $region43: #{self_attention.4} parent=31 // pred_region
        _
      $region44: #{self_attention.4} parent=31 // pred_fallthru
        _
    $region32: #{self_attention.4} parent=5 // pred_fallthru
      _
    %p546 = scmp.le.s32.totalorder 2, %s9
    // Predicated region
    $region45: #{self_attention.4} parent=5 // pred_check
      %p547 = pneg %p546
    $region46: #{self_attention.4} parent=5 // pred_check_branch
      %549 = sbr.rel (%p547) target = $region48
    $region47: #{self_attention.4} parent=5 // pred_region
      %s550 = ssub.s32 %s9, 2
      // Predicated region
      $region49: #{self_attention.4} parent=47 // pred_check
        %p551 = pneg %p158
      $region50: #{self_attention.4} parent=47 // pred_check_branch
        %553 = sbr.rel (%p551) target = $region52
      $region51: #{self_attention.4} parent=47 // pred_region
        %p554 = scmp.lt.s32.totalorder %s24, 1
        %s555 = scalar_select %p554, %s24, 1
        %p556 = scmp.lt.s32.totalorder %s25, 3
        %s557 = scalar_select %p556, %s25, 3
        %p558 = scmp.lt.s32.totalorder %s26, 0
        %s559 = scalar_select %p558, %s26, 0
        %s560 = sadd.s32 %s559, %s557
        %s561 = smul.addr %s555, 4
        %s562 = sadd.s32 %s560, %s561
        %s563 = smul.addr %s562, 8
        %s564 = scalar_lea.vmem %s3, %s563
      $region52: #{self_attention.4} parent=47 // pred_fallthru
        _
    $region48: #{self_attention.4} parent=5 // pred_fallthru
      _
  $region6: #{self_attention.4} parent=0 // loop_footer
    %s13 = sadd.s32 1, %s9
  $region7: #{self_attention.4} parent=0 // loop_footer_branch
    %8 = sbr.rel target = $region3
  $region8: #{self_attention.4} parent=0 // loop_exit
    _

// kernel: self_attention.5
$region0: #{self_attention.5}
  #allocation0 [shape = 'u32[]', space=smem, size = 0x4, offset = 0x4, fixed_abs, tag = 'smem constant byte address 0x4 - core index']
  #allocation1 [shape = 'u32[144,128]{1,0:T(1,128)}', space=vmem, size = 0x12000, scoped, tag = 'internal scratch']
  %s0 = inlined_call_operand.vmem [shape: f32[2,8,32], index: 0, kind: input, shape index: {}]
  %s1 = inlined_call_operand.vmem [shape: f32[32,32], index: 1, kind: input, shape index: {}]
  %s2 = inlined_call_operand.vmem [shape: f32[1,32], index: 2, kind: input, shape index: {}]
  %s3 = inlined_call_operand.hbm [shape: f32[2,8,32], index: 3, kind: output, shape index: {}]
  %s4 = sld [smem:[#allocation0]]
  $region45: #{self_attention.5} parent=0
    _
  %s6 = ssub.s32 1, %s4
  %s7 = scalar_select 0, %s6, %s4
  $region1: #{self_attention.5} parent=0
    #allocation2 [shape = 'u8[8192]{0}', space=vmem, size = 0x2000, scoped, tag = 'output window, operand 0']
    #allocation3 [shape = 's32[2]{0}', space=sflag, size = 0x8, scoped, tag = 'scoped memory for self_attention.5']
    %8 = vsyncpa [#allocation3], 0
    %s9 = scalar_lea.sflag [#allocation3], 1
    %10 = vsyncpa %s9, 0
    loop: start=0, step=1, limit=4
    $region2: #{self_attention.5} parent=1 // loop_pre_header
      _
    $region3: #{self_attention.5} parent=1 // loop_header
      %s12 = sphi 0, %s16
      %p13 = scmp.ge.s32.totalorder %s12, 4
      %s19 = sphi 0, %s38
      %s20 = sphi 0, %s34
      %s21 = sphi 0, %s30
      %s22 = sphi 0, %s19
      %s23 = sphi 0, %s20
      %s24 = sphi 0, %s21
      %s25 = sphi 0, %s22
      %s26 = sphi 0, %s23
      %s27 = sphi 0, %s24
      %s43 = sphi 0, %s45
      %s46 = sphi 0, %s43
      %s47 = sphi 0, %s46
      %s63 = sphi 0, %s47
      %s69 = sphi 0, %s71
      %s72 = sphi 0, %s69
      %s73 = sphi 0, %s72
      %s89 = sphi 0, %s73
      %s95 = sphi 0, %s97
      %s98 = sphi 0, %s95
      %s99 = sphi 0, %s98
      %s115 = sphi 0, %s99
      %s125 = sphi 0, %s127
      %s128 = sphi 0, %s125
      %s129 = sphi 0, %s128
      %s145 = sphi 0, %s129
    $region4: #{self_attention.5} parent=1 // loop_header_branch
      %15 = sbr.rel (%p13) target = $region8
    $region5: #{self_attention.5} parent=1 // loop_body
      %s17 = ssub.s32 %s12, 1
      %s18 = ssub.s32 %s12, 2
      %s28 = sadd.s32 1, %s21
      %p29 = scmp.ge.s32.totalorder %s28, 1
      %s30 = scalar_select %p29, 0, %s28
      %s31 = sadd.s32 1, %s20
      %s32 = scalar_select %p29, %s31, %s20
      %p33 = scmp.ge.s32.totalorder %s32, 1
      %s34 = scalar_select %p33, 0, %s32
      %s35 = sadd.s32 1, %s19
      %s36 = scalar_select %p33, %s35, %s19
      %p37 = scmp.ge.s32.totalorder %s36, 2
      %s38 = scalar_select %p37, 0, %s36
      %s39 = ssub.s32 %s19, %s38
      %s40 = ssub.s32 %s20, %s34
      %s41 = sor.u32 %s39, %s40
      %p42 = scmp.eq.s32.totalorder %s41, 0
      %s44 = sadd.s32 %s43, 1
      %s45 = scalar_select %p42, %s43, %s44
      %p48 = pneg %p42
      %p49 = scmp.eq.s32.totalorder %s12, 1
      %p50 = por %p48, %p49
      %p51 = scmp.ne.s32.totalorder %s43, %s46
      %p52 = scmp.eq.s32.totalorder %s12, 0
      %p53 = por %p51, %p52
      %p54 = scmp.ne.s32.totalorder %s43, %s46
      %p55 = scmp.eq.s32.totalorder %s17, 1
      %p56 = por %p54, %p55
      %p57 = scmp.ne.s32.totalorder %s46, %s47
      %p58 = scmp.eq.s32.totalorder %s17, 0
      %p59 = por %p57, %p58
      %p60 = scmp.ne.s32.totalorder %s46, %s47
      %p61 = scmp.eq.s32.totalorder %s18, 1
      %p62 = por %p60, %p61
      %p64 = scmp.ne.s32.totalorder %s47, %s63
      %p65 = scmp.eq.s32.totalorder %s18, 0
      %p66 = por %p64, %p65
      %s67 = ssub.s32 %s21, %s30
      %p68 = scmp.eq.s32.totalorder %s67, 0
      %s70 = sadd.s32 %s69, 1
      %s71 = scalar_select %p68, %s69, %s70
      %p74 = pneg %p68
      %p75 = scmp.eq.s32.totalorder %s12, 1
      %p76 = por %p74, %p75
      %p77 = scmp.ne.s32.totalorder %s69, %s72
      %p78 = scmp.eq.s32.totalorder %s12, 0
      %p79 = por %p77, %p78
      %p80 = scmp.ne.s32.totalorder %s69, %s72
      %p81 = scmp.eq.s32.totalorder %s17, 1
      %p82 = por %p80, %p81
      %p83 = scmp.ne.s32.totalorder %s72, %s73
      %p84 = scmp.eq.s32.totalorder %s17, 0
      %p85 = por %p83, %p84
      %p86 = scmp.ne.s32.totalorder %s72, %s73
      %p87 = scmp.eq.s32.totalorder %s18, 1
      %p88 = por %p86, %p87
      %p90 = scmp.ne.s32.totalorder %s73, %s89
      %p91 = scmp.eq.s32.totalorder %s18, 0
      %p92 = por %p90, %p91
      %s93 = ssub.s32 %s21, %s30
      %p94 = scmp.eq.s32.totalorder %s93, 0
      %s96 = sadd.s32 %s95, 1
      %s97 = scalar_select %p94, %s95, %s96
      %p100 = pneg %p94
      %p101 = scmp.eq.s32.totalorder %s12, 1
      %p102 = por %p100, %p101
      %p103 = scmp.ne.s32.totalorder %s95, %s98
      %p104 = scmp.eq.s32.totalorder %s12, 0
      %p105 = por %p103, %p104
      %p106 = scmp.ne.s32.totalorder %s95, %s98
      %p107 = scmp.eq.s32.totalorder %s17, 1
      %p108 = por %p106, %p107
      %p109 = scmp.ne.s32.totalorder %s98, %s99
      %p110 = scmp.eq.s32.totalorder %s17, 0
      %p111 = por %p109, %p110
      %p112 = scmp.ne.s32.totalorder %s98, %s99
      %p113 = scmp.eq.s32.totalorder %s18, 1
      %p114 = por %p112, %p113
      %p116 = scmp.ne.s32.totalorder %s99, %s115
      %p117 = scmp.eq.s32.totalorder %s18, 0
      %p118 = por %p116, %p117
      %s119 = ssub.s32 %s19, %s38
      %s120 = ssub.s32 %s20, %s34
      %s121 = sor.u32 %s119, %s120
      %s122 = ssub.s32 %s21, %s30
      %s123 = sor.u32 %s121, %s122
      %p124 = scmp.eq.s32.totalorder %s123, 0
      %s126 = sadd.s32 %s125, 1
      %s127 = scalar_select %p124, %s125, %s126
      %p130 = pneg %p124
      %p131 = scmp.eq.s32.totalorder %s12, 1
      %p132 = por %p130, %p131
      %p133 = scmp.ne.s32.totalorder %s125, %s128
      %p134 = scmp.eq.s32.totalorder %s12, 0
      %p135 = por %p133, %p134
      %p136 = scmp.ne.s32.totalorder %s125, %s128
      %p137 = scmp.eq.s32.totalorder %s17, 1
      %p138 = por %p136, %p137
      %p139 = scmp.ne.s32.totalorder %s128, %s129
      %p140 = scmp.eq.s32.totalorder %s17, 0
      %p141 = por %p139, %p140
      %p142 = scmp.ne.s32.totalorder %s128, %s129
      %p143 = scmp.eq.s32.totalorder %s18, 1
      %p144 = por %p142, %p143
      %p146 = scmp.ne.s32.totalorder %s129, %s145
      %p147 = scmp.eq.s32.totalorder %s18, 0
      %p148 = por %p146, %p147
      %p149 = scmp.le.s32.totalorder 1, %s12
      %p150 = scmp.lt.s32.totalorder %s12, 3
      %p151 = pnand %p149, %p150
      %p152 = pneg %p151
      // Predicated region
      $region9: #{self_attention.5} parent=5 // pred_check
        _
      $region10: #{self_attention.5} parent=5 // pred_check_branch
        %154 = sbr.rel (%p151) target = $region12
      $region11: #{self_attention.5} parent=5 // pred_region
        %s155 = ssub.s32 %s12, 1
        // Predicated region
        $region13: #{self_attention.5} parent=11 // pred_check
          %p156 = pneg %p85
        $region14: #{self_attention.5} parent=11 // pred_check_branch
          %158 = sbr.rel (%p156) target = $region16
        $region15: #{self_attention.5} parent=11 // pred_region
          %p159 = scmp.lt.s32.totalorder %s24, 0
          %s160 = scalar_select %p159, %s24, 0
          %s161 = smul.addr %s160, 8
          %s162 = scalar_lea.vmem %s1, %s161
        $region16: #{self_attention.5} parent=11 // pred_fallthru
          _
        // Predicated region
        $region17: #{self_attention.5} parent=11 // pred_check
          %p163 = pneg %p111
        $region18: #{self_attention.5} parent=11 // pred_check_branch
          %165 = sbr.rel (%p163) target = $region20
        $region19: #{self_attention.5} parent=11 // pred_region
          %p166 = scmp.lt.s32.totalorder %s24, 0
          %s167 = scalar_select %p166, %s24, 0
          %s168 = scalar_lea.vmem %s2, %s167
        $region20: #{self_attention.5} parent=11 // pred_fallthru
          _
      $region12: #{self_attention.5} parent=5 // pred_fallthru
        _
      %p169 = scmp.lt.s32.totalorder %s12, 2
      // Predicated region
      $region21: #{self_attention.5} parent=5 // pred_check
        %p170 = pneg %p169
      $region22: #{self_attention.5} parent=5 // pred_check_branch
        %172 = sbr.rel (%p170) target = $region24
      $region23: #{self_attention.5} parent=5 // pred_region
        // Predicated region
        $region25: #{self_attention.5} parent=23 // pred_check
          %p173 = pneg %p53
        $region26: #{self_attention.5} parent=23 // pred_check_branch
          %175 = sbr.rel (%p173) target = $region28
        $region27: #{self_attention.5} parent=23 // pred_region
          %p176 = scmp.lt.s32.totalorder %s19, 1
          %s177 = scalar_select %p176, %s19, 1
          %p178 = scmp.lt.s32.totalorder %s20, 0
          %s179 = scalar_select %p178, %s20, 0
          %s180 = sadd.s32 %s179, %s177
          %s181 = smul.addr %s180, 8
          %s182 = scalar_lea.vmem %s0, %s181
        $region28: #{self_attention.5} parent=23 // pred_fallthru
          _
      $region24: #{self_attention.5} parent=5 // pred_fallthru
        _
      %p183 = scmp.le.s32.totalorder 1, %s12
      %p184 = scmp.lt.s32.totalorder %s12, 3
      %p185 = pnand %p183, %p184
      %p186 = pneg %p185
      // Predicated region
      $region29: #{self_attention.5} parent=5 // pred_check
        _
      $region30: #{self_attention.5} parent=5 // pred_check_branch
        %188 = sbr.rel (%p185) target = $region32
      $region31: #{self_attention.5} parent=5 // pred_region
        %s189 = ssub.s32 %s12, 1
        %p190 = scmp.lt.s32.totalorder %s22, 1
        %s191 = scalar_select %p190, %s22, 1
        %p192 = scmp.lt.s32.totalorder %s23, 0
        %s193 = scalar_select %p192, %s23, 0
        %s194 = sadd.s32 %s193, %s191
        %s195 = smul.addr %s194, 8
        %s196 = scalar_lea.vmem %s0, %s195
        %p197 = pneg %p59
        %p198 = pneg %p56
        %p199 = scmp.lt.s32.totalorder %s24, 0
        %s200 = scalar_select %p199, %s24, 0
        %s201 = smul.addr %s200, 8
        %s202 = scalar_lea.vmem %s1, %s201
        %p203 = pneg %p85
        %p204 = pneg %p82
        %p205 = scmp.lt.s32.totalorder %s24, 0
        %s206 = scalar_select %p205, %s24, 0
        %s207 = scalar_lea.vmem %s2, %s206
        %p208 = pneg %p111
        %p209 = pneg %p108
        %p210 = pneg %p141
        %p211 = pneg %p138
        %s212 = sand.u32 %s128, 1
        %s213 = scalar_lea.sflag [#allocation3], %s212
        %s214 = sand.u32 %s128, 1
        %s215 = smul.addr %s214, 8
        %s216 = scalar_lea.vmem [#allocation2], %s215
        %p217 = scmp.lt.s32.totalorder %s22, 1
        %s218 = scalar_select %p217, %s22, 1
        %p219 = scmp.lt.s32.totalorder %s23, 0
        %s220 = scalar_select %p219, %s23, 0
        %s221 = sadd.s32 %s220, %s218
        %s222 = smul.addr %s221, 8
        %s223 = scalar_lea.vmem %s0, %s222
        %p224 = scmp.lt.s32.totalorder %s24, 0
        %s225 = scalar_select %p224, %s24, 0
        %s226 = smul.addr %s225, 8
        %s227 = scalar_lea.vmem %s1, %s226
        %p228 = scmp.lt.s32.totalorder %s24, 0
        %s229 = scalar_select %p228, %s24, 0
        %s230 = scalar_lea.vmem %s2, %s229
        %v231 = vld [vmem:[%s223] sm:$0xff]
        %v232 = vld [vmem:[%s227] sm:$0xff]
        %v233 = vld [vmem:[%s227 + $0x8] sm:$0xff]
        %v234 = vld [vmem:[%s227 + $0x10] sm:$0xff]
        %v235 = vld [vmem:[%s227 + $0x18] sm:$0xff]
        %v236 = vld [vmem:[%s230] sm:$0x1]
        %v238 = vlaneseq
        %v239 = vshrl.u32 %v238, 7
        %v240 = vsub.s32 0, %v239
        %v241 = vrot.slane %v236, %v240
        %vm243 = vcmask 261120
        %v245 = vsel %vm243, %v231, 0
        %247 = vmatprep.subr.mxu0 0.0
        %248 = vmatpush1.msra.mxu0 0.0
        %249 = vmatprep.subr.mxu0 0.0
        %250 = vmatpush1.msra.mxu0 0.0
        %251 = vmatprep.subr.mxu0 0.0
        %252 = vmatpush1.msra.mxu0 0.0
        %253 = vmatprep.subr.mxu0 0.0
        %254 = vmatpush1.msra.mxu0 0.0
        %255 = vmatprep.subr.mxu0 0.0
        %256 = vmatpush1.msra.mxu0 0.0
        %257 = vmatprep.subr.mxu0 0.0
        %258 = vmatpush1.msra.mxu0 0.0
        %259 = vmatprep.subr.mxu0 0.0
        %260 = vmatpush1.msra.mxu0 0.0
        %261 = vmatprep.subr.mxu0 0.0
        %262 = vmatpush1.msra.mxu0 0.0
        %263 = vmatprep.subr.mxu0 0.0
        %264 = vmatpush1.msra.mxu0 0.0
        %265 = vmatprep.subr.mxu0 0.0
        %266 = vmatpush1.msra.mxu0 0.0
        %267 = vmatprep.subr.mxu0 0.0
        %268 = vmatpush1.msra.mxu0 0.0
        %269 = vmatprep.subr.mxu0 0.0
        %270 = vmatpush1.msra.mxu0 0.0
        %271 = vmatprep.subr.mxu0 0.0
        %272 = vmatpush1.msra.mxu0 %v235
        %273 = vmatprep.subr.mxu0 0.0
        %274 = vmatpush1.msra.mxu0 %v234
        %275 = vmatprep.subr.mxu0 0.0
        %276 = vmatpush1.msra.mxu0 %v233
        %277 = vmatprep.subr.mxu0 0.0
        %278 = vmatpush1.msra.mxu0 %v232
        %279 = vmatprep.subr.mxu0 0.0
        %280 = vmatpush2.msra.mxu0 0.0
        %281 = vmatprep.subr.mxu0 0.0
        %282 = vmatpush2.msra.mxu0 0.0
        %283 = vmatprep.subr.mxu0 0.0
        %284 = vmatpush2.msra.mxu0 0.0
        %285 = vmatprep.subr.mxu0 0.0
        %286 = vmatpush2.msra.mxu0 0.0
        %287 = vmatprep.subr.mxu0 0.0
        %288 = vmatpush2.msra.mxu0 0.0
        %289 = vmatprep.subr.mxu0 0.0
        %290 = vmatpush2.msra.mxu0 0.0
        %291 = vmatprep.subr.mxu0 0.0
        %292 = vmatpush2.msra.mxu0 0.0
        %293 = vmatprep.subr.mxu0 0.0
        %294 = vmatpush2.msra.mxu0 0.0
        %295 = vmatprep.subr.mxu0 0.0
        %296 = vmatpush2.msra.mxu0 0.0
        %297 = vmatprep.subr.mxu0 0.0
        %298 = vmatpush2.msra.mxu0 0.0
        %299 = vmatprep.subr.mxu0 0.0
        %300 = vmatpush2.msra.mxu0 0.0
        %301 = vmatprep.subr.mxu0 0.0
        %302 = vmatpush2.msra.mxu0 0.0
        %303 = vmatprep.subr.mxu0 0.0
        %304 = vmatpush2.msra.mxu0 0.0
        %305 = vmatprep.subr.mxu0 0.0
        %306 = vmatpush2.msra.mxu0 0.0
        %307 = vmatprep.subr.mxu0 0.0
        %308 = vmatpush2.msra.mxu0 0.0
        %309 = vmatprep.subr.mxu0 0.0
        %310 = vmatpush2.msra.mxu0 0.0
        %311 = vmatprep.mubr.f32.mxu0 0.0
        %312 = vmatmul.mubr.f32.gmra.mxu0 %v245
        %v313 = vpop.f32.mrf.mxu0
        %v314 = vadd.f32 %v241, %v313
        %v315 = vpop.f32.mrf.mxu0
        %316 = vdwg.mxu0
        %317 = vst.msk [vmem:[%s216] sm:$0xff] %vm243, %v314
        %s318 = sand.u32 %s128, 1
        %s319 = scalar_lea.sflag [#allocation3], %s318
        %s320 = sand.u32 %s128, 1
        %s321 = smul.addr %s320, 8
        %s322 = scalar_lea.vmem [#allocation2], %s321
        // Predicated region
        $region33: #{self_attention.5} parent=31 // pred_check
          %p323 = pneg %p138
        $region34: #{self_attention.5} parent=31 // pred_check_branch
          %325 = sbr.rel (%p323) target = $region36
        $region35: #{self_attention.5} parent=31 // pred_region
          %s327 = ssub.s32 128, 128
          %328 = vsyncadd %s319, %s327
          %s329 = sadd.s32 %s24, %s23
          %s330 = sadd.s32 %s329, %s22
          %s331 = smul.addr %s330, 128
          %s332 = scalar_lea.hbm %s3, %s331
          %s334 = sshll.u32 %s322, 4
          %s335 = int_to_ptr.vmem [resolvable:$true] %s334
          %337 = dma.vmem_to_hbm [thread:$0]  %s335, 128, %s332, %s319
        $region36: #{self_attention.5} parent=31 // pred_fallthru
          _
      $region32: #{self_attention.5} parent=5 // pred_fallthru
        _
      %p338 = scmp.le.s32.totalorder 2, %s12
      // Predicated region
      $region37: #{self_attention.5} parent=5 // pred_check
        %p339 = pneg %p338
      $region38: #{self_attention.5} parent=5 // pred_check_branch
        %341 = sbr.rel (%p339) target = $region40
      $region39: #{self_attention.5} parent=5 // pred_region
        %s342 = ssub.s32 %s12, 2
        // Predicated region
        $region41: #{self_attention.5} parent=39 // pred_check
          %p343 = pneg %p144
        $region42: #{self_attention.5} parent=39 // pred_check_branch
          %345 = sbr.rel (%p343) target = $region44
        $region43: #{self_attention.5} parent=39 // pred_region
          %s346 = sand.u32 %s129, 1
          %s347 = scalar_lea.sflag [#allocation3], %s346
          %s348 = sand.u32 %s129, 1
          %s349 = smul.addr %s348, 8
          %s350 = scalar_lea.vmem [#allocation2], %s349
          %351 = dma.done %s347, 128
        $region44: #{self_attention.5} parent=39 // pred_fallthru
          _
      $region40: #{self_attention.5} parent=5 // pred_fallthru
        _
    $region6: #{self_attention.5} parent=1 // loop_footer
      %s16 = sadd.s32 1, %s12
    $region7: #{self_attention.5} parent=1 // loop_footer_branch
      %11 = sbr.rel target = $region3
    $region8: #{self_attention.5} parent=1 // loop_exit
      _
    %352 = vsyncpa [#allocation3], 1
    %s353 = scalar_lea.sflag [#allocation3], 1
    %354 = vsyncpa %s353, 1

</llo_original>
